<compile_context>
chip_gen: v5e
topology: v5e:2x2
jax: 0.10.0
libtpu: 0.0.40
codegen_flags: <defaults>
</compile_context>

<pallas_src>
import functools

import jax
import jax.numpy as jnp
from jax.experimental import pallas as pl
from jax.experimental.pallas import tpu as pltpu


# ----------------------------- helpers (pure jnp) -----------------------------

def _layer_norm(x, g, b, eps=1e-5):
    mu = jnp.mean(x, axis=-1, keepdims=True)
    var = jnp.mean((x - mu) ** 2, axis=-1, keepdims=True)
    return (x - mu) * jax.lax.rsqrt(var + eps) * g + b


# ------------------------------ fused encoder kernel ---------------------------

def clip_encoder_kernel(num_heads, head_dim, bt, S, D,
                        x_ref, vecd_ref, b1_ref,
                        wq_ref, wk_ref, wv_ref, wo_ref, w1_ref, w2_ref,
                        fg_ref, fb_ref,
                        out_ref, acc_ref):
    """One grid step = one CLIPEncoderLayer applied to one batch tile (bt sequences).

    Grid = (num_batch_tiles, num_layers); activations are carried across the layer
    axis in `acc_ref` (VMEM, f32); final LN + output store happen at the last layer.
    """
    layer = pl.program_id(1)
    n_layers = pl.num_programs(1)
    BH = bt * num_heads

    # initialize the activation carry from the embeddings at the first layer
    @pl.when(layer == 0)
    def _():
        acc_ref[...] = x_ref[...].astype(jnp.float32)

    x = acc_ref[...]                                        # (bt, S, D) f32

    # packed per-layer vectors: one small DMA instead of ten
    vecs = vecd_ref[0]                                      # (9, D) f32
    ln1_g, ln1_b = vecs[0:1], vecs[1:2]
    bq, bk, bv, bo = vecs[2:3], vecs[3:4], vecs[4:5], vecs[5:6]   # bq already scaled
    ln2_g, ln2_b = vecs[6:7], vecs[7:8]
    b2 = vecs[8:9]
    b1 = b1_ref[0]                                          # (1, I) f32

    # causal additive mask built in-kernel (no (S,S) DMA per step).
    # -1e30 instead of finfo.min: identical softmax result, avoids -inf propagation.
    r_idx = jax.lax.broadcasted_iota(jnp.int32, (S, S), 0)
    c_idx = jax.lax.broadcasted_iota(jnp.int32, (S, S), 1)
    causal = jnp.where(c_idx > r_idx, -1e30, 0.0).astype(jnp.float32)

    # ---------------- self-attention block (pre-LN) ----------------
    # 1/sqrt(head_dim) is folded into wq / bq (done once in the wrapper).
    h = _layer_norm(x, ln1_g, ln1_b).astype(jnp.bfloat16)   # bf16 matmul inputs
    q = jnp.einsum("bsd,de->bse", h, wq_ref[0], preferred_element_type=jnp.float32) + bq
    k = jnp.einsum("bsd,de->bse", h, wk_ref[0], preferred_element_type=jnp.float32) + bk
    v = jnp.einsum("bsd,de->bse", h, wv_ref[0], preferred_element_type=jnp.float32) + bv

    def to_heads(z):                                        # (bt, S, D) -> (BH, hd, S)
        # batched last-two-dim transpose + sublane-aligned leading split (cheap)
        zt = jnp.swapaxes(z, -1, -2)                        # (bt, D, S)
        return zt.reshape(BH, head_dim, S).astype(jnp.bfloat16)

    q_h = jnp.swapaxes(to_heads(q), -1, -2)                 # (BH, S, hd)
    k_h = to_heads(k)                                       # (BH, hd, S)
    v_h = to_heads(v)                                       # (BH, hd, S)

    # single batched (bt*H) score matmul on the MXU, f32 accumulation
    s = jnp.einsum("bqd,bdk->bqk", q_h, k_h,
                   preferred_element_type=jnp.float32) + causal[None]
    s = s - jnp.max(s, axis=-1, keepdims=True)
    p = jnp.exp(s)
    p = p * pl.reciprocal(jnp.sum(p, axis=-1, keepdims=True), approx=True)

    # context: (BH, hd, S_q); merge heads back to lane-dense (bt, S, D)
    ctx = jnp.einsum("bdk,bqk->bdq", v_h, p.astype(jnp.bfloat16),
                     preferred_element_type=jnp.float32)    # (BH, hd, S)
    ctx = jnp.swapaxes(ctx.reshape(bt, D, S), -1, -2)       # (bt, S, D) f32

    attn = jnp.einsum("bsd,de->bse", ctx.astype(jnp.bfloat16), wo_ref[0],
                      preferred_element_type=jnp.float32) + bo
    x = x + attn                                            # residual in f32

    # ---------------- MLP block (quick_gelu, as in CLIP) ----------------
    h2 = _layer_norm(x, ln2_g, ln2_b).astype(jnp.bfloat16)
    a = jnp.einsum("bsd,di->bsi", h2, w1_ref[0],
                   preferred_element_type=jnp.float32) + b1
    a = (a * jax.nn.sigmoid(1.702 * a)).astype(jnp.bfloat16)   # bf16 temp: halves VMEM
    m = jnp.einsum("bsi,id->bsd", a, w2_ref[0],
                   preferred_element_type=jnp.float32) + b2
    x = x + m

    acc_ref[...] = x

    # fold the final LayerNorm into the last layer step and write the output once
    @pl.when(layer == n_layers - 1)
    def _():
        out_ref[...] = _layer_norm(x, fg_ref[...], fb_ref[...])


# ------------------------------ pallas_call wrapper ----------------------------

def prepare_kernel_params(params, num_heads):
    """Pack the small per-layer vectors and fold the attention scale into q_proj."""
    D = params["wq"].shape[1]
    scale = (D // num_heads) ** -0.5
    vecs_d = jnp.concatenate([
        params["ln1_g"], params["ln1_b"],
        params["bq"] * scale, params["bk"], params["bv"], params["bo"],
        params["ln2_g"], params["ln2_b"],
        params["b2"],
    ], axis=1)                                              # (L, 9, D) f32
    return {
        "vecs_d": vecs_d,
        "b1": params["b1"],                                 # (L, 1, I) f32
        "wq": (params["wq"].astype(jnp.float32) * scale).astype(jnp.bfloat16),
        "wk": params["wk"], "wv": params["wv"], "wo": params["wo"],
        "w1": params["w1"], "w2": params["w2"],
        "final_ln_g": params["final_ln_g"], "final_ln_b": params["final_ln_b"],
    }


def run_clip_encoder(x, kparams, num_heads, batch_tile=None):
    B, S, D = x.shape
    L = kparams["wq"].shape[0]
    I = kparams["w1"].shape[2]
    assert D % num_heads == 0
    head_dim = D // num_heads
    # default: one batch tile (nb=1) so the per-layer weight stream is fetched once
    bt = batch_tile if batch_tile is not None else B
    assert B % bt == 0
    nb = B // bt

    def lspec(*shape):   # per-layer stacked parameter: block (1, *shape) at layer l
        n = len(shape)
        return pl.BlockSpec((1,) + shape, lambda b, l, _n=n: (l,) + (0,) * _n)

    in_specs = [
        pl.BlockSpec((bt, S, D), lambda b, l: (b, 0, 0)),   # embeddings
        lspec(9, D),                                        # packed LN params + biases
        lspec(1, I),                                        # fc1 bias
        lspec(D, D), lspec(D, D), lspec(D, D), lspec(D, D), # q/k/v/out proj weights
        lspec(D, I), lspec(I, D),                           # fc1 / fc2 weights
        pl.BlockSpec((1, D), lambda b, l: (0, 0)),          # final LN gamma
        pl.BlockSpec((1, D), lambda b, l: (0, 0)),          # final LN beta
    ]

    # generation-aware VMEM budget: 75% of physical, capped (fits v7x 64 MiB,
    # exploits v5e/v6e 128 MiB for deeper weight buffering / bigger batch tiles).
    try:
        vmem_cap = pltpu.get_tpu_info().vmem_capacity_bytes
    except Exception:
        vmem_cap = 64 * 1024 * 1024
    vmem_limit = int(min(vmem_cap * 3 // 4, 112 * 1024 * 1024))

    kernel = functools.partial(clip_encoder_kernel, num_heads, head_dim, bt, S, D)
    return pl.pallas_call(
        kernel,
        out_shape=jax.ShapeDtypeStruct((B, S, D), jnp.float32),
        grid=(nb, L),                                       # layer axis MUST be innermost
        in_specs=in_specs,
        out_specs=pl.BlockSpec((bt, S, D), lambda b, l: (b, 0, 0)),
        scratch_shapes=[pltpu.VMEM((bt, S, D), jnp.float32)],
        compiler_params=pltpu.CompilerParams(
            dimension_semantics=("parallel", "arbitrary"),  # batch tiles || layers seq
            vmem_limit_bytes=vmem_limit,
        ),
    )(x, kparams["vecs_d"], kparams["b1"],
      kparams["wq"], kparams["wk"], kparams["wv"], kparams["wo"],
      kparams["w1"], kparams["w2"],
      kparams["final_ln_g"], kparams["final_ln_b"])


# ------------------------------ model forward ----------------------------------

def clip_text_forward(input_ids, params, num_heads, batch_tile=None):
    """Equivalent of FrozenCLIPEmbedderT3.forward after tokenization:
       token+position embeddings -> N encoder layers (causal mask) -> final LN."""
    B, S = input_ids.shape
    # embedding gather is glue; the hot path is the fused Pallas encoder kernel
    x = (params["token_embedding"][input_ids]
         + params["position_embedding"][None, :S, :]).astype(jnp.float32)
    # pad seq to a sublane multiple: causal mask keeps pad keys out of real queries,
    # pad query rows are dropped below.
    S_pad = ((S + 7) // 8) * 8
    if S_pad != S:
        x = jnp.pad(x, ((0, 0), (0, S_pad - S), (0, 0)))
    kparams = prepare_kernel_params(params, num_heads)
    z = run_clip_encoder(x, kparams, num_heads, batch_tile)
    return z[:, :S, :]


# ------------------------------ pure-JAX reference ------------------------------

def clip_text_forward_ref(input_ids, params, num_heads):
    B, S = input_ids.shape
    D = params["token_embedding"].shape[1]
    hd = D // num_heads
    x = (params["token_embedding"][input_ids]
         + params["position_embedding"][None, :S, :]).astype(jnp.float32)
    rows = jnp.arange(S)[:, None]
    cols = jnp.arange(S)[None, :]
    mask = jnp.where(cols > rows, -1e30, 0.0).astype(jnp.float32)
    L = params["wq"].shape[0]
    for l in range(L):
        h = _layer_norm(x, params["ln1_g"][l], params["ln1_b"][l]).astype(jnp.bfloat16)
        q = (jnp.einsum("bsd,de->bse", h, params["wq"][l],
                        preferred_element_type=jnp.float32) + params["bq"][l]) * hd ** -0.5
        k = jnp.einsum("bsd,de->bse", h, params["wk"][l],
                       preferred_element_type=jnp.float32) + params["bk"][l]
        v = jnp.einsum("bsd,de->bse", h, params["wv"][l],
                       preferred_element_type=jnp.float32) + params["bv"][l]
        qh = q.reshape(B, S, num_heads, hd).astype(jnp.bfloat16)
        kh = k.reshape(B, S, num_heads, hd).astype(jnp.bfloat16)
        vh = v.reshape(B, S, num_heads, hd).astype(jnp.bfloat16)
        s = jnp.einsum("bqhd,bkhd->bhqk", qh, kh,
                       preferred_element_type=jnp.float32) + mask
        p = jax.nn.softmax(s, axis=-1)
        ctx = jnp.einsum("bhqk,bkhd->bqhd", p.astype(jnp.bfloat16), vh,
                         preferred_element_type=jnp.float32).reshape(B, S, D)
        attn = jnp.einsum("bsd,de->bse", ctx.astype(jnp.bfloat16), params["wo"][l],
                          preferred_element_type=jnp.float32) + params["bo"][l]
        x = x + attn
        h2 = _layer_norm(x, params["ln2_g"][l], params["ln2_b"][l]).astype(jnp.bfloat16)
        a = jnp.einsum("bsd,di->bsi", h2, params["w1"][l],
                       preferred_element_type=jnp.float32) + params["b1"][l]
        a = a * jax.nn.sigmoid(1.702 * a)
        m = jnp.einsum("bsi,id->bsd", a.astype(jnp.bfloat16), params["w2"][l],
                       preferred_element_type=jnp.float32) + params["b2"][l]
        x = x + m
    return _layer_norm(x, params["final_ln_g"], params["final_ln_b"])


# ------------------------------ deterministic init ------------------------------

def init_params(key, vocab, max_pos, D, I, num_layers):
    """Per-layer weights stacked along a leading L axis; matmul weights in bf16,
    LayerNorm params / biases / embeddings in f32. Weight layout is [in, out]."""
    ks = jax.random.split(key, 16)
    L = num_layers

    def w(k, shape):
        return (0.02 * jax.random.normal(k, shape, jnp.float32)).astype(jnp.bfloat16)

    def b(k, shape):
        return 0.02 * jax.random.normal(k, shape, jnp.float32)

    return {
        "token_embedding": 0.02 * jax.random.normal(ks[0], (vocab, D), jnp.float32),
        "position_embedding": 0.02 * jax.random.normal(ks[1], (max_pos, D), jnp.float32),
        "ln1_g": 1.0 + 0.05 * jax.random.normal(ks[8], (L, 1, D), jnp.float32),
        "ln1_b": b(ks[9], (L, 1, D)),
        "wq": w(ks[2], (L, D, D)), "bq": b(ks[10], (L, 1, D)),
        "wk": w(ks[3], (L, D, D)), "bk": b(ks[11], (L, 1, D)),
        "wv": w(ks[4], (L, D, D)), "bv": b(ks[12], (L, 1, D)),
        "wo": w(ks[5], (L, D, D)), "bo": b(ks[13], (L, 1, D)),
        "ln2_g": 1.0 + 0.05 * jax.random.normal(ks[14], (L, 1, D), jnp.float32),
        "ln2_b": b(ks[15], (L, 1, D)),
        "w1": w(ks[6], (L, D, I)), "b1": jnp.zeros((L, 1, I), jnp.float32),
        "w2": w(ks[7], (L, I, D)), "b2": jnp.zeros((L, 1, D), jnp.float32),
        "final_ln_g": jnp.ones((1, D), jnp.float32),
        "final_ln_b": jnp.zeros((1, D), jnp.float32),
    }


# ------------------------------------ main --------------------------------------

if __name__ == "__main__":
    B, S, D, H, I = 2, 8, 64, 4, 128         # batch, seq (max_length), hidden, heads, mlp
    VOCAB, MAX_POS, NUM_LAYERS = 100, 8, 2

    key = jax.random.PRNGKey(0)
    k_params, k_ids = jax.random.split(key)
    params = init_params(k_params, VOCAB, MAX_POS, D, I, NUM_LAYERS)

    # stands in for tokenizer(text)["input_ids"] padded to max_length
    input_ids = jax.random.randint(k_ids, (B, S), 0, VOCAB, dtype=jnp.int32)

    z = clip_text_forward(input_ids, params, num_heads=H)
    jax.block_until_ready(z)
    assert z.shape == (B, S, D)

    # numerical sanity check against a pure-JAX reference (same bf16/f32 policy)
    z_ref = clip_text_forward_ref(input_ids, params, num_heads=H)
    err = float(jnp.max(jnp.abs(z - z_ref)))
    assert err < 5e-2, f"max abs error {err}"

    print("KERNEL_OK")
</pallas_src>

<mosaic_0001>
module attributes {stable_mosaic.version = 11 : i64} {
  func.func @clip_encoder_kernel(%arg0: i32, %arg1: i32, %arg2: memref<2x8x64xf32, #tpu.memory_space<vmem>>, %arg3: memref<1x9x64xf32, #tpu.memory_space<vmem>>, %arg4: memref<1x1x128xf32, #tpu.memory_space<vmem>>, %arg5: memref<1x64x64xbf16, #tpu.memory_space<vmem>>, %arg6: memref<1x64x64xbf16, #tpu.memory_space<vmem>>, %arg7: memref<1x64x64xbf16, #tpu.memory_space<vmem>>, %arg8: memref<1x64x64xbf16, #tpu.memory_space<vmem>>, %arg9: memref<1x64x128xbf16, #tpu.memory_space<vmem>>, %arg10: memref<1x128x64xbf16, #tpu.memory_space<vmem>>, %arg11: memref<1x64xf32, #tpu.memory_space<vmem>>, %arg12: memref<1x64xf32, #tpu.memory_space<vmem>>, %arg13: memref<2x8x64xf32, #tpu.memory_space<vmem>>, %arg14: memref<2x8x64xf32, #tpu.memory_space<vmem>>) attributes {dimension_semantics = [#tpu.dimension_semantics<parallel>, #tpu.dimension_semantics<arbitrary>], iteration_bounds = array<i64: 1, 2>, scalar_prefetch = 0 : i64, scratch_operands = 1 : i64, tpu.core_type = #tpu.core_type<tc>, window_params = [{transform_indices = @transform_0, window_bounds = array<i64: 2, 8, 64>}, {transform_indices = @transform_1, window_bounds = array<i64: 1, 9, 64>}, {transform_indices = @transform_2, window_bounds = array<i64: 1, 1, 128>}, {transform_indices = @transform_3, window_bounds = array<i64: 1, 64, 64>}, {transform_indices = @transform_4, window_bounds = array<i64: 1, 64, 64>}, {transform_indices = @transform_5, window_bounds = array<i64: 1, 64, 64>}, {transform_indices = @transform_6, window_bounds = array<i64: 1, 64, 64>}, {transform_indices = @transform_7, window_bounds = array<i64: 1, 64, 128>}, {transform_indices = @transform_8, window_bounds = array<i64: 1, 128, 64>}, {pipeline_mode = #tpu.pipeline_mode<synchronous>, transform_indices = @transform_9, window_bounds = array<i64: 1, 64>}, {pipeline_mode = #tpu.pipeline_mode<synchronous>, transform_indices = @transform_10, window_bounds = array<i64: 1, 64>}, {transform_indices = @transform_11, window_bounds = array<i64: 2, 8, 64>}]} {
    %c0_i32 = arith.constant 0 : i32
    %0 = arith.cmpi eq, %arg1, %c0_i32 : i32
    %1 = arith.extui %0 : i1 to i32
    %c0_i32_0 = arith.constant 0 : i32
    %2 = arith.cmpi ne, %1, %c0_i32_0 : i32
    scf.if %2 {
      %c0_54 = arith.constant 0 : index
      %c0_55 = arith.constant 0 : index
      %c0_56 = arith.constant 0 : index
      %153 = vector.load %arg2[%c0_54, %c0_55, %c0_56] : memref<2x8x64xf32, #tpu.memory_space<vmem>>, vector<2x8x64xf32>
      %c0_57 = arith.constant 0 : index
      %c0_58 = arith.constant 0 : index
      %c0_59 = arith.constant 0 : index
      %154 = vector.load %arg14[%c0_57, %c0_58, %c0_59] : memref<2x8x64xf32, #tpu.memory_space<vmem>>, vector<2x8x64xf32>
      tpu.vector_store %arg14[%c0_57, %c0_58, %c0_59], %153 {strides = array<i32>} : memref<2x8x64xf32, #tpu.memory_space<vmem>>, vector<2x8x64xf32>,
    } else {
    }
    %c0 = arith.constant 0 : index
    %c0_1 = arith.constant 0 : index
    %c0_2 = arith.constant 0 : index
    %3 = vector.load %arg14[%c0, %c0_1, %c0_2] : memref<2x8x64xf32, #tpu.memory_space<vmem>>, vector<2x8x64xf32>
    %c0_3 = arith.constant 0 : index
    %c0_4 = arith.constant 0 : index
    %c0_5 = arith.constant 0 : index
    %4 = vector.load %arg3[%c0_3, %c0_4, %c0_5] : memref<1x9x64xf32, #tpu.memory_space<vmem>>, vector<1x9x64xf32>
    %5 = vector.shape_cast %4 : vector<1x9x64xf32> to vector<9x64xf32>
    %6 = vector.extract_strided_slice %5 {offsets = [0, 0], sizes = [1, 64], strides = [1, 1]} : vector<9x64xf32> to vector<1x64xf32>
    %7 = vector.extract_strided_slice %5 {offsets = [1, 0], sizes = [1, 64], strides = [1, 1]} : vector<9x64xf32> to vector<1x64xf32>
    %8 = vector.extract_strided_slice %5 {offsets = [2, 0], sizes = [1, 64], strides = [1, 1]} : vector<9x64xf32> to vector<1x64xf32>
    %9 = vector.extract_strided_slice %5 {offsets = [3, 0], sizes = [1, 64], strides = [1, 1]} : vector<9x64xf32> to vector<1x64xf32>
    %10 = vector.extract_strided_slice %5 {offsets = [4, 0], sizes = [1, 64], strides = [1, 1]} : vector<9x64xf32> to vector<1x64xf32>
    %11 = vector.extract_strided_slice %5 {offsets = [5, 0], sizes = [1, 64], strides = [1, 1]} : vector<9x64xf32> to vector<1x64xf32>
    %12 = vector.extract_strided_slice %5 {offsets = [6, 0], sizes = [1, 64], strides = [1, 1]} : vector<9x64xf32> to vector<1x64xf32>
    %13 = vector.extract_strided_slice %5 {offsets = [7, 0], sizes = [1, 64], strides = [1, 1]} : vector<9x64xf32> to vector<1x64xf32>
    %14 = vector.extract_strided_slice %5 {offsets = [8, 0], sizes = [1, 64], strides = [1, 1]} : vector<9x64xf32> to vector<1x64xf32>
    %c0_6 = arith.constant 0 : index
    %c0_7 = arith.constant 0 : index
    %c0_8 = arith.constant 0 : index
    %15 = vector.load %arg4[%c0_6, %c0_7, %c0_8] : memref<1x1x128xf32, #tpu.memory_space<vmem>>, vector<1x1x128xf32>
    %16 = vector.shape_cast %15 : vector<1x1x128xf32> to vector<1x128xf32>
    %17 = tpu.iota {dimensions = array<i32: 0>} : vector<8x8xi32>
    %18 = tpu.iota {dimensions = array<i32: 1>} : vector<8x8xi32>
    %19 = arith.cmpi sgt, %18, %17 : vector<8x8xi32>
    %cst = arith.constant -1.000000e+30 : f32
    %cst_9 = arith.constant 0.000000e+00 : f32
    %20 = vector.broadcast %cst : f32 to vector<8x8xf32>
    %21 = vector.broadcast %cst_9 : f32 to vector<8x8xf32>
    %22 = arith.select %19, %20, %21 : vector<8x8xi1>, vector<8x8xf32>
    %cst_10 = arith.constant dense<0.000000e+00> : vector<2x8xf32>
    %23 = vector.multi_reduction <add>, %3, %cst_10 [2] : vector<2x8x64xf32> to vector<2x8xf32>
    %24 = vector.shape_cast %23 : vector<2x8xf32> to vector<2x8x1xf32>
    %cst_11 = arith.constant 6.400000e+01 : f32
    %25 = vector.broadcast %cst_11 : f32 to vector<2x8x1xf32>
    %26 = arith.divf %24, %25 : vector<2x8x1xf32>
    %27 = vector.broadcast %26 : vector<2x8x1xf32> to vector<2x8x64xf32>
    %28 = arith.subf %3, %27 : vector<2x8x64xf32>
    %29 = arith.mulf %28, %28 : vector<2x8x64xf32>
    %cst_12 = arith.constant dense<0.000000e+00> : vector<2x8xf32>
    %30 = vector.multi_reduction <add>, %29, %cst_12 [2] : vector<2x8x64xf32> to vector<2x8xf32>
    %31 = vector.shape_cast %30 : vector<2x8xf32> to vector<2x8x1xf32>
    %cst_13 = arith.constant 6.400000e+01 : f32
    %32 = vector.broadcast %cst_13 : f32 to vector<2x8x1xf32>
    %33 = arith.divf %31, %32 : vector<2x8x1xf32>
    %34 = vector.broadcast %26 : vector<2x8x1xf32> to vector<2x8x64xf32>
    %35 = arith.subf %3, %34 : vector<2x8x64xf32>
    %cst_14 = arith.constant 9.99999974E-6 : f32
    %36 = vector.broadcast %cst_14 : f32 to vector<2x8x1xf32>
    %37 = arith.addf %33, %36 : vector<2x8x1xf32>
    %38 = math.rsqrt %37 : vector<2x8x1xf32>
    %39 = vector.broadcast %38 : vector<2x8x1xf32> to vector<2x8x64xf32>
    %40 = arith.mulf %35, %39 : vector<2x8x64xf32>
    %41 = vector.shape_cast %6 : vector<1x64xf32> to vector<1x1x64xf32>
    %42 = vector.broadcast %41 : vector<1x1x64xf32> to vector<2x8x64xf32>
    %43 = arith.mulf %40, %42 : vector<2x8x64xf32>
    %44 = vector.shape_cast %7 : vector<1x64xf32> to vector<1x1x64xf32>
    %45 = vector.broadcast %44 : vector<1x1x64xf32> to vector<2x8x64xf32>
    %46 = arith.addf %43, %45 : vector<2x8x64xf32>
    %47 = arith.truncf %46 : vector<2x8x64xf32> to vector<2x8x64xbf16>
    %c0_15 = arith.constant 0 : index
    %c0_16 = arith.constant 0 : index
    %c0_17 = arith.constant 0 : index
    %48 = vector.load %arg5[%c0_15, %c0_16, %c0_17] : memref<1x64x64xbf16, #tpu.memory_space<vmem>>, vector<1x64x64xbf16>
    %49 = vector.shape_cast %48 : vector<1x64x64xbf16> to vector<64x64xbf16>
    "tpu.trace_start"() <{level = 10 : i32, message = "bsd,de->bse"}> : () -> ()
    %cst_18 = arith.constant dense<0.000000e+00> : vector<2x8x64xf32>
    %50 = tpu.matmul %47, %49, %cst_18 {dimension_numbers = #tpu.dot_dimension_numbers<[2], [0], [0, 1], [1], [0, 0, 0, 1, 1, 1], [], []>} : vector<2x8x64xbf16>, vector<64x64xbf16>, vector<2x8x64xf32> -> vector<2x8x64xf32>
    "tpu.trace_stop"() : () -> ()
    %51 = vector.shape_cast %8 : vector<1x64xf32> to vector<1x1x64xf32>
    %52 = vector.broadcast %51 : vector<1x1x64xf32> to vector<2x8x64xf32>
    %53 = arith.addf %50, %52 : vector<2x8x64xf32>
    %c0_19 = arith.constant 0 : index
    %c0_20 = arith.constant 0 : index
    %c0_21 = arith.constant 0 : index
    %54 = vector.load %arg6[%c0_19, %c0_20, %c0_21] : memref<1x64x64xbf16, #tpu.memory_space<vmem>>, vector<1x64x64xbf16>
    %55 = vector.shape_cast %54 : vector<1x64x64xbf16> to vector<64x64xbf16>
    "tpu.trace_start"() <{level = 10 : i32, message = "bsd,de->bse"}> : () -> ()
    %cst_22 = arith.constant dense<0.000000e+00> : vector<2x8x64xf32>
    %56 = tpu.matmul %47, %55, %cst_22 {dimension_numbers = #tpu.dot_dimension_numbers<[2], [0], [0, 1], [1], [0, 0, 0, 1, 1, 1], [], []>} : vector<2x8x64xbf16>, vector<64x64xbf16>, vector<2x8x64xf32> -> vector<2x8x64xf32>
    "tpu.trace_stop"() : () -> ()
    %57 = vector.shape_cast %9 : vector<1x64xf32> to vector<1x1x64xf32>
    %58 = vector.broadcast %57 : vector<1x1x64xf32> to vector<2x8x64xf32>
    %59 = arith.addf %56, %58 : vector<2x8x64xf32>
    %c0_23 = arith.constant 0 : index
    %c0_24 = arith.constant 0 : index
    %c0_25 = arith.constant 0 : index
    %60 = vector.load %arg7[%c0_23, %c0_24, %c0_25] : memref<1x64x64xbf16, #tpu.memory_space<vmem>>, vector<1x64x64xbf16>
    %61 = vector.shape_cast %60 : vector<1x64x64xbf16> to vector<64x64xbf16>
    "tpu.trace_start"() <{level = 10 : i32, message = "bsd,de->bse"}> : () -> ()
    %cst_26 = arith.constant dense<0.000000e+00> : vector<2x8x64xf32>
    %62 = tpu.matmul %47, %61, %cst_26 {dimension_numbers = #tpu.dot_dimension_numbers<[2], [0], [0, 1], [1], [0, 0, 0, 1, 1, 1], [], []>} : vector<2x8x64xbf16>, vector<64x64xbf16>, vector<2x8x64xf32> -> vector<2x8x64xf32>
    "tpu.trace_stop"() : () -> ()
    %63 = vector.shape_cast %10 : vector<1x64xf32> to vector<1x1x64xf32>
    %64 = vector.broadcast %63 : vector<1x1x64xf32> to vector<2x8x64xf32>
    %65 = arith.addf %62, %64 : vector<2x8x64xf32>
    %66 = tpu.transpose %53, [0, 2, 1] : vector<2x8x64xf32> -> vector<2x64x8xf32>
    %67 = vector.shape_cast %66 : vector<2x64x8xf32> to vector<8x16x8xf32>
    %68 = arith.truncf %67 : vector<8x16x8xf32> to vector<8x16x8xbf16>
    %69 = tpu.transpose %68, [0, 2, 1] : vector<8x16x8xbf16> -> vector<8x8x16xbf16>
    %70 = tpu.transpose %59, [0, 2, 1] : vector<2x8x64xf32> -> vector<2x64x8xf32>
    %71 = vector.shape_cast %70 : vector<2x64x8xf32> to vector<8x16x8xf32>
    %72 = arith.truncf %71 : vector<8x16x8xf32> to vector<8x16x8xbf16>
    %73 = tpu.transpose %65, [0, 2, 1] : vector<2x8x64xf32> -> vector<2x64x8xf32>
    %74 = vector.shape_cast %73 : vector<2x64x8xf32> to vector<8x16x8xf32>
    %75 = arith.truncf %74 : vector<8x16x8xf32> to vector<8x16x8xbf16>
    "tpu.trace_start"() <{level = 10 : i32, message = "bqd,bdk->bqk"}> : () -> ()
    %cst_27 = arith.constant dense<0.000000e+00> : vector<8x8x8xf32>
    %76 = tpu.matmul %69, %72, %cst_27 {dimension_numbers = #tpu.dot_dimension_numbers<[2], [1], [1], [2], [0, 0, 0, 1, 1, 2], [0], [0]>} : vector<8x8x16xbf16>, vector<8x16x8xbf16>, vector<8x8x8xf32> -> vector<8x8x8xf32>
    "tpu.trace_stop"() : () -> ()
    %77 = vector.shape_cast %22 : vector<8x8xf32> to vector<1x8x8xf32>
    %78 = vector.broadcast %77 : vector<1x8x8xf32> to vector<8x8x8xf32>
    %79 = arith.addf %76, %78 : vector<8x8x8xf32>
    %cst_28 = arith.constant dense<0xFF800000> : vector<8x8xf32>
    %80 = vector.multi_reduction <maximumf>, %79, %cst_28 [2] : vector<8x8x8xf32> to vector<8x8xf32>
    %81 = vector.shape_cast %80 : vector<8x8xf32> to vector<8x8x1xf32>
    %82 = vector.broadcast %81 : vector<8x8x1xf32> to vector<8x8x8xf32>
    %83 = arith.subf %79, %82 : vector<8x8x8xf32>
    %84 = math.exp %83 : vector<8x8x8xf32>
    %cst_29 = arith.constant dense<0.000000e+00> : vector<8x8xf32>
    %85 = vector.multi_reduction <add>, %84, %cst_29 [2] : vector<8x8x8xf32> to vector<8x8xf32>
    %86 = vector.shape_cast %85 : vector<8x8xf32> to vector<8x8x1xf32>
    %87 = tpu.reciprocal %86 {approx = true} : vector<8x8x1xf32> -> vector<8x8x1xf32>
    %88 = vector.broadcast %87 : vector<8x8x1xf32> to vector<8x8x8xf32>
    %89 = arith.mulf %84, %88 : vector<8x8x8xf32>
    %90 = arith.truncf %89 : vector<8x8x8xf32> to vector<8x8x8xbf16>
    "tpu.trace_start"() <{level = 10 : i32, message = "bdk,bqk->bdq"}> : () -> ()
    %cst_30 = arith.constant dense<0.000000e+00> : vector<8x16x8xf32>
    %91 = tpu.matmul %75, %90, %cst_30 {dimension_numbers = #tpu.dot_dimension_numbers<[2], [2], [1], [1], [0, 0, 0, 1, 1, 1], [0], [0]>} : vector<8x16x8xbf16>, vector<8x8x8xbf16>, vector<8x16x8xf32> -> vector<8x16x8xf32>
    "tpu.trace_stop"() : () -> ()
    %92 = vector.shape_cast %91 : vector<8x16x8xf32> to vector<2x64x8xf32>
    %93 = tpu.transpose %92, [0, 2, 1] : vector<2x64x8xf32> -> vector<2x8x64xf32>
    %94 = arith.truncf %93 : vector<2x8x64xf32> to vector<2x8x64xbf16>
    %c0_31 = arith.constant 0 : index
    %c0_32 = arith.constant 0 : index
    %c0_33 = arith.constant 0 : index
    %95 = vector.load %arg8[%c0_31, %c0_32, %c0_33] : memref<1x64x64xbf16, #tpu.memory_space<vmem>>, vector<1x64x64xbf16>
    %96 = vector.shape_cast %95 : vector<1x64x64xbf16> to vector<64x64xbf16>
    "tpu.trace_start"() <{level = 10 : i32, message = "bsd,de->bse"}> : () -> ()
    %cst_34 = arith.constant dense<0.000000e+00> : vector<2x8x64xf32>
    %97 = tpu.matmul %94, %96, %cst_34 {dimension_numbers = #tpu.dot_dimension_numbers<[2], [0], [0, 1], [1], [0, 0, 0, 1, 1, 1], [], []>} : vector<2x8x64xbf16>, vector<64x64xbf16>, vector<2x8x64xf32> -> vector<2x8x64xf32>
    "tpu.trace_stop"() : () -> ()
    %98 = vector.shape_cast %11 : vector<1x64xf32> to vector<1x1x64xf32>
    %99 = vector.broadcast %98 : vector<1x1x64xf32> to vector<2x8x64xf32>
    %100 = arith.addf %97, %99 : vector<2x8x64xf32>
    %101 = arith.addf %3, %100 : vector<2x8x64xf32>
    %cst_35 = arith.constant dense<0.000000e+00> : vector<2x8xf32>
    %102 = vector.multi_reduction <add>, %101, %cst_35 [2] : vector<2x8x64xf32> to vector<2x8xf32>
    %103 = vector.shape_cast %102 : vector<2x8xf32> to vector<2x8x1xf32>
    %cst_36 = arith.constant 6.400000e+01 : f32
    %104 = vector.broadcast %cst_36 : f32 to vector<2x8x1xf32>
    %105 = arith.divf %103, %104 : vector<2x8x1xf32>
    %106 = vector.broadcast %105 : vector<2x8x1xf32> to vector<2x8x64xf32>
    %107 = arith.subf %101, %106 : vector<2x8x64xf32>
    %108 = arith.mulf %107, %107 : vector<2x8x64xf32>
    %cst_37 = arith.constant dense<0.000000e+00> : vector<2x8xf32>
    %109 = vector.multi_reduction <add>, %108, %cst_37 [2] : vector<2x8x64xf32> to vector<2x8xf32>
    %110 = vector.shape_cast %109 : vector<2x8xf32> to vector<2x8x1xf32>
    %cst_38 = arith.constant 6.400000e+01 : f32
    %111 = vector.broadcast %cst_38 : f32 to vector<2x8x1xf32>
    %112 = arith.divf %110, %111 : vector<2x8x1xf32>
    %113 = vector.broadcast %105 : vector<2x8x1xf32> to vector<2x8x64xf32>
    %114 = arith.subf %101, %113 : vector<2x8x64xf32>
    %cst_39 = arith.constant 9.99999974E-6 : f32
    %115 = vector.broadcast %cst_39 : f32 to vector<2x8x1xf32>
    %116 = arith.addf %112, %115 : vector<2x8x1xf32>
    %117 = math.rsqrt %116 : vector<2x8x1xf32>
    %118 = vector.broadcast %117 : vector<2x8x1xf32> to vector<2x8x64xf32>
    %119 = arith.mulf %114, %118 : vector<2x8x64xf32>
    %120 = vector.shape_cast %12 : vector<1x64xf32> to vector<1x1x64xf32>
    %121 = vector.broadcast %120 : vector<1x1x64xf32> to vector<2x8x64xf32>
    %122 = arith.mulf %119, %121 : vector<2x8x64xf32>
    %123 = vector.shape_cast %13 : vector<1x64xf32> to vector<1x1x64xf32>
    %124 = vector.broadcast %123 : vector<1x1x64xf32> to vector<2x8x64xf32>
    %125 = arith.addf %122, %124 : vector<2x8x64xf32>
    %126 = arith.truncf %125 : vector<2x8x64xf32> to vector<2x8x64xbf16>
    %c0_40 = arith.constant 0 : index
    %c0_41 = arith.constant 0 : index
    %c0_42 = arith.constant 0 : index
    %127 = vector.load %arg9[%c0_40, %c0_41, %c0_42] : memref<1x64x128xbf16, #tpu.memory_space<vmem>>, vector<1x64x128xbf16>
    %128 = vector.shape_cast %127 : vector<1x64x128xbf16> to vector<64x128xbf16>
    "tpu.trace_start"() <{level = 10 : i32, message = "bsd,di->bsi"}> : () -> ()
    %cst_43 = arith.constant dense<0.000000e+00> : vector<2x8x128xf32>
    %129 = tpu.matmul %126, %128, %cst_43 {dimension_numbers = #tpu.dot_dimension_numbers<[2], [0], [0, 1], [1], [0, 0, 0, 1, 1, 1], [], []>} : vector<2x8x64xbf16>, vector<64x128xbf16>, vector<2x8x128xf32> -> vector<2x8x128xf32>
    "tpu.trace_stop"() : () -> ()
    %130 = vector.shape_cast %16 : vector<1x128xf32> to vector<1x1x128xf32>
    %131 = vector.broadcast %130 : vector<1x1x128xf32> to vector<2x8x128xf32>
    %132 = arith.addf %129, %131 : vector<2x8x128xf32>
    %cst_44 = arith.constant 1.702000e+00 : f32
    %133 = vector.broadcast %cst_44 : f32 to vector<2x8x128xf32>
    %134 = arith.mulf %133, %132 : vector<2x8x128xf32>
    %135 = arith.negf %134 : vector<2x8x128xf32>
    %136 = math.exp %135 : vector<2x8x128xf32>
    %cst_45 = arith.constant 1.000000e+00 : f32
    %137 = vector.broadcast %cst_45 : f32 to vector<2x8x128xf32>
    %138 = arith.addf %137, %136 : vector<2x8x128xf32>
    %139 = arith.divf %137, %138 : vector<2x8x128xf32>
    %140 = arith.mulf %132, %139 : vector<2x8x128xf32>
    %141 = arith.truncf %140 : vector<2x8x128xf32> to vector<2x8x128xbf16>
    %c0_46 = arith.constant 0 : index
    %c0_47 = arith.constant 0 : index
    %c0_48 = arith.constant 0 : index
    %142 = vector.load %arg10[%c0_46, %c0_47, %c0_48] : memref<1x128x64xbf16, #tpu.memory_space<vmem>>, vector<1x128x64xbf16>
    %143 = vector.shape_cast %142 : vector<1x128x64xbf16> to vector<128x64xbf16>
    "tpu.trace_start"() <{level = 10 : i32, message = "bsi,id->bsd"}> : () -> ()
    %cst_49 = arith.constant dense<0.000000e+00> : vector<2x8x64xf32>
    %144 = tpu.matmul %141, %143, %cst_49 {dimension_numbers = #tpu.dot_dimension_numbers<[2], [0], [0, 1], [1], [0, 0, 0, 1, 1, 1], [], []>} : vector<2x8x128xbf16>, vector<128x64xbf16>, vector<2x8x64xf32> -> vector<2x8x64xf32>
    "tpu.trace_stop"() : () -> ()
    %145 = vector.shape_cast %14 : vector<1x64xf32> to vector<1x1x64xf32>
    %146 = vector.broadcast %145 : vector<1x1x64xf32> to vector<2x8x64xf32>
    %147 = arith.addf %144, %146 : vector<2x8x64xf32>
    %148 = arith.addf %101, %147 : vector<2x8x64xf32>
    %c0_50 = arith.constant 0 : index
    %c0_51 = arith.constant 0 : index
    %c0_52 = arith.constant 0 : index
    %149 = vector.load %arg14[%c0_50, %c0_51, %c0_52] : memref<2x8x64xf32, #tpu.memory_space<vmem>>, vector<2x8x64xf32>
    tpu.vector_store %arg14[%c0_50, %c0_51, %c0_52], %148 {strides = array<i32>} : memref<2x8x64xf32, #tpu.memory_space<vmem>>, vector<2x8x64xf32>,
    %c1_i32 = arith.constant 1 : i32
    %150 = arith.cmpi eq, %arg1, %c1_i32 : i32
    %151 = arith.extui %150 : i1 to i32
    %c0_i32_53 = arith.constant 0 : i32
    %152 = arith.cmpi ne, %151, %c0_i32_53 : i32
    scf.if %152 {
      %c0_54 = arith.constant 0 : index
      %c0_55 = arith.constant 0 : index
      %153 = vector.load %arg11[%c0_54, %c0_55] : memref<1x64xf32, #tpu.memory_space<vmem>>, vector<1x64xf32>
      %c0_56 = arith.constant 0 : index
      %c0_57 = arith.constant 0 : index
      %154 = vector.load %arg12[%c0_56, %c0_57] : memref<1x64xf32, #tpu.memory_space<vmem>>, vector<1x64xf32>
      %cst_58 = arith.constant dense<0.000000e+00> : vector<2x8xf32>
      %155 = vector.multi_reduction <add>, %148, %cst_58 [2] : vector<2x8x64xf32> to vector<2x8xf32>
      %156 = vector.shape_cast %155 : vector<2x8xf32> to vector<2x8x1xf32>
      %cst_59 = arith.constant 6.400000e+01 : f32
      %157 = vector.broadcast %cst_59 : f32 to vector<2x8x1xf32>
      %158 = arith.divf %156, %157 : vector<2x8x1xf32>
      %159 = vector.broadcast %158 : vector<2x8x1xf32> to vector<2x8x64xf32>
      %160 = arith.subf %148, %159 : vector<2x8x64xf32>
      %161 = arith.mulf %160, %160 : vector<2x8x64xf32>
      %cst_60 = arith.constant dense<0.000000e+00> : vector<2x8xf32>
      %162 = vector.multi_reduction <add>, %161, %cst_60 [2] : vector<2x8x64xf32> to vector<2x8xf32>
      %163 = vector.shape_cast %162 : vector<2x8xf32> to vector<2x8x1xf32>
      %cst_61 = arith.constant 6.400000e+01 : f32
      %164 = vector.broadcast %cst_61 : f32 to vector<2x8x1xf32>
      %165 = arith.divf %163, %164 : vector<2x8x1xf32>
      %166 = vector.broadcast %158 : vector<2x8x1xf32> to vector<2x8x64xf32>
      %167 = arith.subf %148, %166 : vector<2x8x64xf32>
      %cst_62 = arith.constant 9.99999974E-6 : f32
      %168 = vector.broadcast %cst_62 : f32 to vector<2x8x1xf32>
      %169 = arith.addf %165, %168 : vector<2x8x1xf32>
      %170 = math.rsqrt %169 : vector<2x8x1xf32>
      %171 = vector.broadcast %170 : vector<2x8x1xf32> to vector<2x8x64xf32>
      %172 = arith.mulf %167, %171 : vector<2x8x64xf32>
      %173 = vector.shape_cast %153 : vector<1x64xf32> to vector<1x1x64xf32>
      %174 = vector.broadcast %173 : vector<1x1x64xf32> to vector<2x8x64xf32>
      %175 = arith.mulf %172, %174 : vector<2x8x64xf32>
      %176 = vector.shape_cast %154 : vector<1x64xf32> to vector<1x1x64xf32>
      %177 = vector.broadcast %176 : vector<1x1x64xf32> to vector<2x8x64xf32>
      %178 = arith.addf %175, %177 : vector<2x8x64xf32>
      %c0_63 = arith.constant 0 : index
      %c0_64 = arith.constant 0 : index
      %c0_65 = arith.constant 0 : index
      %179 = vector.load %arg13[%c0_63, %c0_64, %c0_65] : memref<2x8x64xf32, #tpu.memory_space<vmem>>, vector<2x8x64xf32>
      tpu.vector_store %arg13[%c0_63, %c0_64, %c0_65], %178 {strides = array<i32>} : memref<2x8x64xf32, #tpu.memory_space<vmem>>, vector<2x8x64xf32>,
    } else {
    }
    return
  }
  func.func @transform_0(%arg0: i32, %arg1: i32) -> (i32, i32, i32) {
    %c0_i32 = arith.constant 0 : i32
    %c0_i32_0 = arith.constant 0 : i32
    %c0_i32_1 = arith.constant 0 : i32
    return %arg0, %c0_i32, %c0_i32_0 : i32, i32, i32
  }
  func.func @transform_1(%arg0: i32, %arg1: i32) -> (i32, i32, i32) {
    %c0_i32 = arith.constant 0 : i32
    %c0_i32_0 = arith.constant 0 : i32
    %c0_i32_1 = arith.constant 0 : i32
    return %arg1, %c0_i32, %c0_i32_0 : i32, i32, i32
  }
  func.func @transform_2(%arg0: i32, %arg1: i32) -> (i32, i32, i32) {
    %c0_i32 = arith.constant 0 : i32
    %c0_i32_0 = arith.constant 0 : i32
    %c0_i32_1 = arith.constant 0 : i32
    return %arg1, %c0_i32, %c0_i32_0 : i32, i32, i32
  }
  func.func @transform_3(%arg0: i32, %arg1: i32) -> (i32, i32, i32) {
    %c0_i32 = arith.constant 0 : i32
    %c0_i32_0 = arith.constant 0 : i32
    %c0_i32_1 = arith.constant 0 : i32
    return %arg1, %c0_i32, %c0_i32_0 : i32, i32, i32
  }
  func.func @transform_4(%arg0: i32, %arg1: i32) -> (i32, i32, i32) {
    %c0_i32 = arith.constant 0 : i32
    %c0_i32_0 = arith.constant 0 : i32
    %c0_i32_1 = arith.constant 0 : i32
    return %arg1, %c0_i32, %c0_i32_0 : i32, i32, i32
  }
  func.func @transform_5(%arg0: i32, %arg1: i32) -> (i32, i32, i32) {
    %c0_i32 = arith.constant 0 : i32
    %c0_i32_0 = arith.constant 0 : i32
    %c0_i32_1 = arith.constant 0 : i32
    return %arg1, %c0_i32, %c0_i32_0 : i32, i32, i32
  }
  func.func @transform_6(%arg0: i32, %arg1: i32) -> (i32, i32, i32) {
    %c0_i32 = arith.constant 0 : i32
    %c0_i32_0 = arith.constant 0 : i32
    %c0_i32_1 = arith.constant 0 : i32
    return %arg1, %c0_i32, %c0_i32_0 : i32, i32, i32
  }
  func.func @transform_7(%arg0: i32, %arg1: i32) -> (i32, i32, i32) {
    %c0_i32 = arith.constant 0 : i32
    %c0_i32_0 = arith.constant 0 : i32
    %c0_i32_1 = arith.constant 0 : i32
    return %arg1, %c0_i32, %c0_i32_0 : i32, i32, i32
  }
  func.func @transform_8(%arg0: i32, %arg1: i32) -> (i32, i32, i32) {
    %c0_i32 = arith.constant 0 : i32
    %c0_i32_0 = arith.constant 0 : i32
    %c0_i32_1 = arith.constant 0 : i32
    return %arg1, %c0_i32, %c0_i32_0 : i32, i32, i32
  }
  func.func @transform_9(%arg0: i32, %arg1: i32) -> (i32, i32) {
    %c0_i32 = arith.constant 0 : i32
    %c0_i32_0 = arith.constant 0 : i32
    %c0_i32_1 = arith.constant 0 : i32
    return %c0_i32, %c0_i32_0 : i32, i32
  }
  func.func @transform_10(%arg0: i32, %arg1: i32) -> (i32, i32) {
    %c0_i32 = arith.constant 0 : i32
    %c0_i32_0 = arith.constant 0 : i32
    %c0_i32_1 = arith.constant 0 : i32
    return %c0_i32, %c0_i32_0 : i32, i32
  }
  func.func @transform_11(%arg0: i32, %arg1: i32) -> (i32, i32, i32) {
    %c0_i32 = arith.constant 0 : i32
    %c0_i32_0 = arith.constant 0 : i32
    %c0_i32_1 = arith.constant 0 : i32
    return %arg0, %c0_i32, %c0_i32_0 : i32, i32, i32
  }
}

</mosaic_0001>

<llo_original>
// kernel: tpu_custom_call.1
$region0: #{tpu_custom_call.1}
  #allocation0 [shape = 'u32[]', space=smem, size = 0x4, offset = 0x4, fixed_abs, tag = 'smem constant byte address 0x4 - core index']
  #allocation1 [shape = 'u32[72,128]{1,0:T(1,128)}', space=vmem, size = 0x9000, scoped, tag = 'internal scratch']
  #allocation2 [shape = 'f32[2,8,64]{2,1,0:T(8,128)}', space=vmem, size = 0x2000, scoped, tag = 'scratch operand']
  %s0 = inlined_call_operand.vmem [shape: f32[2,8,64], index: 0, kind: input, shape index: {}]
  %s1 = inlined_call_operand.vmem [shape: f32[2,9,64], index: 1, kind: input, shape index: {}]
  %s2 = inlined_call_operand.vmem [shape: f32[2,1,128], index: 2, kind: input, shape index: {}]
  %s3 = inlined_call_operand.vmem [shape: bf16[2,64,64], index: 3, kind: input, shape index: {}]
  %s4 = inlined_call_operand.vmem [shape: bf16[2,64,64], index: 4, kind: input, shape index: {}]
  %s5 = inlined_call_operand.vmem [shape: bf16[2,64,64], index: 5, kind: input, shape index: {}]
  %s6 = inlined_call_operand.hbm [shape: bf16[2,64,64], index: 6, kind: input, shape index: {}]
  %s7 = inlined_call_operand.hbm [shape: bf16[2,64,128], index: 7, kind: input, shape index: {}]
  %s8 = inlined_call_operand.vmem [shape: bf16[2,128,64], index: 8, kind: input, shape index: {}]
  %s9 = inlined_call_operand.vmem [shape: f32[1,64], index: 9, kind: input, shape index: {}]
  %s10 = inlined_call_operand.vmem [shape: f32[1,64], index: 10, kind: input, shape index: {}]
  %s11 = inlined_call_operand.hbm [shape: f32[2,8,64], index: 11, kind: output, shape index: {}]
  %s12 = sld [smem:[#allocation0]]
  $region93: #{tpu_custom_call.1} parent=0
    _
  %s14 = ssub.s32 1, %s12
  %s15 = scalar_select 0, %s14, %s12
  $region1: #{tpu_custom_call.1} parent=0
    #allocation3 [shape = 'u8[32768]{0}', space=vmem, size = 0x8000, scoped, tag = 'input window, operand 6']
    #allocation4 [shape = 's32[2]{0}', space=sflag, size = 0x8, scoped, tag = 'scoped memory for tpu_custom_call.1']
    #allocation5 [shape = 's32[2]{0}', space=sflag, size = 0x8, scoped, tag = 'scoped memory for tpu_custom_call.1']
    #allocation6 [shape = 'u8[32768]{0}', space=vmem, size = 0x8000, scoped, tag = 'input window, operand 7']
    #allocation7 [shape = 's32[2]{0}', space=sflag, size = 0x8, scoped, tag = 'scoped memory for tpu_custom_call.1']
    #allocation8 [shape = 'u8[8192]{0}', space=vmem, size = 0x2000, scoped, tag = 'output window, operand 0, single buffered']
    %16 = vsyncpa [#allocation4], 0
    %s17 = scalar_lea.sflag [#allocation4], 1
    %18 = vsyncpa %s17, 0
    %19 = vsyncpa [#allocation7], 0
    %s20 = scalar_lea.sflag [#allocation7], 1
    %21 = vsyncpa %s20, 0
    %22 = vsyncpa [#allocation5], 0
    loop: start=0, step=1, limit=4
    $region2: #{tpu_custom_call.1} parent=1 // loop_pre_header
      _
    $region3: #{tpu_custom_call.1} parent=1 // loop_header
      %s24 = sphi 0, %s28
      %p25 = scmp.ge.s32.totalorder %s24, 4
      %s31 = sphi 0, %s43
      %s32 = sphi 0, %s39
      %s33 = sphi 0, %s31
      %s34 = sphi 0, %s32
      %s35 = sphi 0, %s33
      %s36 = sphi 0, %s34
      %s46 = sphi 0, %s48
      %s49 = sphi 0, %s46
      %s50 = sphi 0, %s49
      %s66 = sphi 0, %s50
      %s72 = sphi 0, %s74
      %s75 = sphi 0, %s72
      %s76 = sphi 0, %s75
      %s92 = sphi 0, %s76
      %s98 = sphi 0, %s100
      %s101 = sphi 0, %s98
      %s102 = sphi 0, %s101
      %s118 = sphi 0, %s102
      %s124 = sphi 0, %s126
      %s127 = sphi 0, %s124
      %s128 = sphi 0, %s127
      %s144 = sphi 0, %s128
      %s150 = sphi 0, %s152
      %s153 = sphi 0, %s150
      %s154 = sphi 0, %s153
      %s170 = sphi 0, %s154
      %s176 = sphi 0, %s178
      %s179 = sphi 0, %s176
      %s180 = sphi 0, %s179
      %s196 = sphi 0, %s180
      %s202 = sphi 0, %s204
      %s205 = sphi 0, %s202
      %s206 = sphi 0, %s205
      %s222 = sphi 0, %s206
      %s228 = sphi 0, %s230
      %s231 = sphi 0, %s228
      %s232 = sphi 0, %s231
      %s248 = sphi 0, %s232
      %s254 = sphi 0, %s256
      %s257 = sphi 0, %s254
      %s258 = sphi 0, %s257
      %s274 = sphi 0, %s258
      %s278 = sphi 0, %s278
      %s280 = sphi 0, %s278
      %s281 = sphi 0, %s280
      %s295 = sphi 0, %s281
      %s299 = sphi 0, %s299
      %s301 = sphi 0, %s299
      %s302 = sphi 0, %s301
      %s316 = sphi 0, %s302
      %s322 = sphi 0, %s324
      %s325 = sphi 0, %s322
      %s326 = sphi 0, %s325
      %s342 = sphi 0, %s326
    $region4: #{tpu_custom_call.1} parent=1 // loop_header_branch
      %27 = sbr.rel (%p25) target = $region8
    $region5: #{tpu_custom_call.1} parent=1 // loop_body
      %s29 = ssub.s32 %s24, 1
      %s30 = ssub.s32 %s24, 2
      %s37 = sadd.s32 1, %s32
      %p38 = scmp.ge.s32.totalorder %s37, 2
      %s39 = scalar_select %p38, 0, %s37
      %s40 = sadd.s32 1, %s31
      %s41 = scalar_select %p38, %s40, %s31
      %p42 = scmp.ge.s32.totalorder %s41, 1
      %s43 = scalar_select %p42, 0, %s41
      %s44 = ssub.s32 %s31, %s43
      %p45 = scmp.eq.s32.totalorder %s44, 0
      %s47 = sadd.s32 %s46, 1
      %s48 = scalar_select %p45, %s46, %s47
      %p51 = pneg %p45
      %p52 = scmp.eq.s32.totalorder %s24, 1
      %p53 = por %p51, %p52
      %p54 = scmp.ne.s32.totalorder %s46, %s49
      %p55 = scmp.eq.s32.totalorder %s24, 0
      %p56 = por %p54, %p55
      %p57 = scmp.ne.s32.totalorder %s46, %s49
      %p58 = scmp.eq.s32.totalorder %s29, 1
      %p59 = por %p57, %p58
      %p60 = scmp.ne.s32.totalorder %s49, %s50
      %p61 = scmp.eq.s32.totalorder %s29, 0
      %p62 = por %p60, %p61
      %p63 = scmp.ne.s32.totalorder %s49, %s50
      %p64 = scmp.eq.s32.totalorder %s30, 1
      %p65 = por %p63, %p64
      %p67 = scmp.ne.s32.totalorder %s50, %s66
      %p68 = scmp.eq.s32.totalorder %s30, 0
      %p69 = por %p67, %p68
      %s70 = ssub.s32 %s32, %s39
      %p71 = scmp.eq.s32.totalorder %s70, 0
      %s73 = sadd.s32 %s72, 1
      %s74 = scalar_select %p71, %s72, %s73
      %p77 = pneg %p71
      %p78 = scmp.eq.s32.totalorder %s24, 1
      %p79 = por %p77, %p78
      %p80 = scmp.ne.s32.totalorder %s72, %s75
      %p81 = scmp.eq.s32.totalorder %s24, 0
      %p82 = por %p80, %p81
      %p83 = scmp.ne.s32.totalorder %s72, %s75
      %p84 = scmp.eq.s32.totalorder %s29, 1
      %p85 = por %p83, %p84
      %p86 = scmp.ne.s32.totalorder %s75, %s76
      %p87 = scmp.eq.s32.totalorder %s29, 0
      %p88 = por %p86, %p87
      %p89 = scmp.ne.s32.totalorder %s75, %s76
      %p90 = scmp.eq.s32.totalorder %s30, 1
      %p91 = por %p89, %p90
      %p93 = scmp.ne.s32.totalorder %s76, %s92
      %p94 = scmp.eq.s32.totalorder %s30, 0
      %p95 = por %p93, %p94
      %s96 = ssub.s32 %s32, %s39
      %p97 = scmp.eq.s32.totalorder %s96, 0
      %s99 = sadd.s32 %s98, 1
      %s100 = scalar_select %p97, %s98, %s99
      %p103 = pneg %p97
      %p104 = scmp.eq.s32.totalorder %s24, 1
      %p105 = por %p103, %p104
      %p106 = scmp.ne.s32.totalorder %s98, %s101
      %p107 = scmp.eq.s32.totalorder %s24, 0
      %p108 = por %p106, %p107
      %p109 = scmp.ne.s32.totalorder %s98, %s101
      %p110 = scmp.eq.s32.totalorder %s29, 1
      %p111 = por %p109, %p110
      %p112 = scmp.ne.s32.totalorder %s101, %s102
      %p113 = scmp.eq.s32.totalorder %s29, 0
      %p114 = por %p112, %p113
      %p115 = scmp.ne.s32.totalorder %s101, %s102
      %p116 = scmp.eq.s32.totalorder %s30, 1
      %p117 = por %p115, %p116
      %p119 = scmp.ne.s32.totalorder %s102, %s118
      %p120 = scmp.eq.s32.totalorder %s30, 0
      %p121 = por %p119, %p120
      %s122 = ssub.s32 %s32, %s39
      %p123 = scmp.eq.s32.totalorder %s122, 0
      %s125 = sadd.s32 %s124, 1
      %s126 = scalar_select %p123, %s124, %s125
      %p129 = pneg %p123
      %p130 = scmp.eq.s32.totalorder %s24, 1
      %p131 = por %p129, %p130
      %p132 = scmp.ne.s32.totalorder %s124, %s127
      %p133 = scmp.eq.s32.totalorder %s24, 0
      %p134 = por %p132, %p133
      %p135 = scmp.ne.s32.totalorder %s124, %s127
      %p136 = scmp.eq.s32.totalorder %s29, 1
      %p137 = por %p135, %p136
      %p138 = scmp.ne.s32.totalorder %s127, %s128
      %p139 = scmp.eq.s32.totalorder %s29, 0
      %p140 = por %p138, %p139
      %p141 = scmp.ne.s32.totalorder %s127, %s128
      %p142 = scmp.eq.s32.totalorder %s30, 1
      %p143 = por %p141, %p142
      %p145 = scmp.ne.s32.totalorder %s128, %s144
      %p146 = scmp.eq.s32.totalorder %s30, 0
      %p147 = por %p145, %p146
      %s148 = ssub.s32 %s32, %s39
      %p149 = scmp.eq.s32.totalorder %s148, 0
      %s151 = sadd.s32 %s150, 1
      %s152 = scalar_select %p149, %s150, %s151
      %p155 = pneg %p149
      %p156 = scmp.eq.s32.totalorder %s24, 1
      %p157 = por %p155, %p156
      %p158 = scmp.ne.s32.totalorder %s150, %s153
      %p159 = scmp.eq.s32.totalorder %s24, 0
      %p160 = por %p158, %p159
      %p161 = scmp.ne.s32.totalorder %s150, %s153
      %p162 = scmp.eq.s32.totalorder %s29, 1
      %p163 = por %p161, %p162
      %p164 = scmp.ne.s32.totalorder %s153, %s154
      %p165 = scmp.eq.s32.totalorder %s29, 0
      %p166 = por %p164, %p165
      %p167 = scmp.ne.s32.totalorder %s153, %s154
      %p168 = scmp.eq.s32.totalorder %s30, 1
      %p169 = por %p167, %p168
      %p171 = scmp.ne.s32.totalorder %s154, %s170
      %p172 = scmp.eq.s32.totalorder %s30, 0
      %p173 = por %p171, %p172
      %s174 = ssub.s32 %s32, %s39
      %p175 = scmp.eq.s32.totalorder %s174, 0
      %s177 = sadd.s32 %s176, 1
      %s178 = scalar_select %p175, %s176, %s177
      %p181 = pneg %p175
      %p182 = scmp.eq.s32.totalorder %s24, 1
      %p183 = por %p181, %p182
      %p184 = scmp.ne.s32.totalorder %s176, %s179
      %p185 = scmp.eq.s32.totalorder %s24, 0
      %p186 = por %p184, %p185
      %p187 = scmp.ne.s32.totalorder %s176, %s179
      %p188 = scmp.eq.s32.totalorder %s29, 1
      %p189 = por %p187, %p188
      %p190 = scmp.ne.s32.totalorder %s179, %s180
      %p191 = scmp.eq.s32.totalorder %s29, 0
      %p192 = por %p190, %p191
      %p193 = scmp.ne.s32.totalorder %s179, %s180
      %p194 = scmp.eq.s32.totalorder %s30, 1
      %p195 = por %p193, %p194
      %p197 = scmp.ne.s32.totalorder %s180, %s196
      %p198 = scmp.eq.s32.totalorder %s30, 0
      %p199 = por %p197, %p198
      %s200 = ssub.s32 %s32, %s39
      %p201 = scmp.eq.s32.totalorder %s200, 0
      %s203 = sadd.s32 %s202, 1
      %s204 = scalar_select %p201, %s202, %s203
      %p207 = pneg %p201
      %p208 = scmp.eq.s32.totalorder %s24, 1
      %p209 = por %p207, %p208
      %p210 = scmp.ne.s32.totalorder %s202, %s205
      %p211 = scmp.eq.s32.totalorder %s24, 0
      %p212 = por %p210, %p211
      %p213 = scmp.ne.s32.totalorder %s202, %s205
      %p214 = scmp.eq.s32.totalorder %s29, 1
      %p215 = por %p213, %p214
      %p216 = scmp.ne.s32.totalorder %s205, %s206
      %p217 = scmp.eq.s32.totalorder %s29, 0
      %p218 = por %p216, %p217
      %p219 = scmp.ne.s32.totalorder %s205, %s206
      %p220 = scmp.eq.s32.totalorder %s30, 1
      %p221 = por %p219, %p220
      %p223 = scmp.ne.s32.totalorder %s206, %s222
      %p224 = scmp.eq.s32.totalorder %s30, 0
      %p225 = por %p223, %p224
      %s226 = ssub.s32 %s32, %s39
      %p227 = scmp.eq.s32.totalorder %s226, 0
      %s229 = sadd.s32 %s228, 1
      %s230 = scalar_select %p227, %s228, %s229
      %p233 = pneg %p227
      %p234 = scmp.eq.s32.totalorder %s24, 1
      %p235 = por %p233, %p234
      %p236 = scmp.ne.s32.totalorder %s228, %s231
      %p237 = scmp.eq.s32.totalorder %s24, 0
      %p238 = por %p236, %p237
      %p239 = scmp.ne.s32.totalorder %s228, %s231
      %p240 = scmp.eq.s32.totalorder %s29, 1
      %p241 = por %p239, %p240
      %p242 = scmp.ne.s32.totalorder %s231, %s232
      %p243 = scmp.eq.s32.totalorder %s29, 0
      %p244 = por %p242, %p243
      %p245 = scmp.ne.s32.totalorder %s231, %s232
      %p246 = scmp.eq.s32.totalorder %s30, 1
      %p247 = por %p245, %p246
      %p249 = scmp.ne.s32.totalorder %s232, %s248
      %p250 = scmp.eq.s32.totalorder %s30, 0
      %p251 = por %p249, %p250
      %s252 = ssub.s32 %s32, %s39
      %p253 = scmp.eq.s32.totalorder %s252, 0
      %s255 = sadd.s32 %s254, 1
      %s256 = scalar_select %p253, %s254, %s255
      %p259 = pneg %p253
      %p260 = scmp.eq.s32.totalorder %s24, 1
      %p261 = por %p259, %p260
      %p262 = scmp.ne.s32.totalorder %s254, %s257
      %p263 = scmp.eq.s32.totalorder %s24, 0
      %p264 = por %p262, %p263
      %p265 = scmp.ne.s32.totalorder %s254, %s257
      %p266 = scmp.eq.s32.totalorder %s29, 1
      %p267 = por %p265, %p266
      %p268 = scmp.ne.s32.totalorder %s257, %s258
      %p269 = scmp.eq.s32.totalorder %s29, 0
      %p270 = por %p268, %p269
      %p271 = scmp.ne.s32.totalorder %s257, %s258
      %p272 = scmp.eq.s32.totalorder %s30, 1
      %p273 = por %p271, %p272
      %p275 = scmp.ne.s32.totalorder %s258, %s274
      %p276 = scmp.eq.s32.totalorder %s30, 0
      %p277 = por %p275, %p276
      %s279 = sadd.s32 %s278, 1
      %p282 = scmp.eq.s32.totalorder %s24, 1
      %p283 = scmp.ne.s32.totalorder %s278, %s280
      %p284 = scmp.eq.s32.totalorder %s24, 0
      %p285 = por %p283, %p284
      %p286 = scmp.ne.s32.totalorder %s278, %s280
      %p287 = scmp.eq.s32.totalorder %s29, 1
      %p288 = por %p286, %p287
      %p289 = scmp.ne.s32.totalorder %s280, %s281
      %p290 = scmp.eq.s32.totalorder %s29, 0
      %p291 = por %p289, %p290
      %p292 = scmp.ne.s32.totalorder %s280, %s281
      %p293 = scmp.eq.s32.totalorder %s30, 1
      %p294 = por %p292, %p293
      %p296 = scmp.ne.s32.totalorder %s281, %s295
      %p297 = scmp.eq.s32.totalorder %s30, 0
      %p298 = por %p296, %p297
      %s300 = sadd.s32 %s299, 1
      %p303 = scmp.eq.s32.totalorder %s24, 1
      %p304 = scmp.ne.s32.totalorder %s299, %s301
      %p305 = scmp.eq.s32.totalorder %s24, 0
      %p306 = por %p304, %p305
      %p307 = scmp.ne.s32.totalorder %s299, %s301
      %p308 = scmp.eq.s32.totalorder %s29, 1
      %p309 = por %p307, %p308
      %p310 = scmp.ne.s32.totalorder %s301, %s302
      %p311 = scmp.eq.s32.totalorder %s29, 0
      %p312 = por %p310, %p311
      %p313 = scmp.ne.s32.totalorder %s301, %s302
      %p314 = scmp.eq.s32.totalorder %s30, 1
      %p315 = por %p313, %p314
      %p317 = scmp.ne.s32.totalorder %s302, %s316
      %p318 = scmp.eq.s32.totalorder %s30, 0
      %p319 = por %p317, %p318
      %s320 = ssub.s32 %s31, %s43
      %p321 = scmp.eq.s32.totalorder %s320, 0
      %s323 = sadd.s32 %s322, 1
      %s324 = scalar_select %p321, %s322, %s323
      %p327 = pneg %p321
      %p328 = scmp.eq.s32.totalorder %s24, 1
      %p329 = por %p327, %p328
      %p330 = scmp.ne.s32.totalorder %s322, %s325
      %p331 = scmp.eq.s32.totalorder %s24, 0
      %p332 = por %p330, %p331
      %p333 = scmp.ne.s32.totalorder %s322, %s325
      %p334 = scmp.eq.s32.totalorder %s29, 1
      %p335 = por %p333, %p334
      %p336 = scmp.ne.s32.totalorder %s325, %s326
      %p337 = scmp.eq.s32.totalorder %s29, 0
      %p338 = por %p336, %p337
      %p339 = scmp.ne.s32.totalorder %s325, %s326
      %p340 = scmp.eq.s32.totalorder %s30, 1
      %p341 = por %p339, %p340
      %p343 = scmp.ne.s32.totalorder %s326, %s342
      %p344 = scmp.eq.s32.totalorder %s30, 0
      %p345 = por %p343, %p344
      %p346 = scmp.le.s32.totalorder 1, %s24
      %p347 = scmp.lt.s32.totalorder %s24, 3
      %p348 = pnand %p346, %p347
      %p349 = pneg %p348
      // Predicated region
      $region9: #{tpu_custom_call.1} parent=5 // pred_check
        _
      $region10: #{tpu_custom_call.1} parent=5 // pred_check_branch
        %351 = sbr.rel (%p348) target = $region12
      $region11: #{tpu_custom_call.1} parent=5 // pred_region
        %s352 = ssub.s32 %s24, 1
        // Predicated region
        $region13: #{tpu_custom_call.1} parent=11 // pred_check
          %p353 = pneg %p62
        $region14: #{tpu_custom_call.1} parent=11 // pred_check_branch
          %355 = sbr.rel (%p353) target = $region16
        $region15: #{tpu_custom_call.1} parent=11 // pred_region
          %s356 = smul.u32 2, %s33
          %p357 = scmp.lt.s32.totalorder %s356, 1
          %s358 = scalar_select %p357, %s356, 1
          %s359 = smul.addr %s358, 8
          %s360 = scalar_lea.vmem %s0, %s359
          %s361 = smul.u32 2, %s33
        $region16: #{tpu_custom_call.1} parent=11 // pred_fallthru
          _
        // Predicated region
        $region17: #{tpu_custom_call.1} parent=11 // pred_check
          %p362 = pneg %p291
        $region18: #{tpu_custom_call.1} parent=11 // pred_check_branch
          %364 = sbr.rel (%p362) target = $region20
        $region19: #{tpu_custom_call.1} parent=11 // pred_region
          _
        $region20: #{tpu_custom_call.1} parent=11 // pred_fallthru
          _
        // Predicated region
        $region21: #{tpu_custom_call.1} parent=11 // pred_check
          %p365 = pneg %p312
        $region22: #{tpu_custom_call.1} parent=11 // pred_check_branch
          %367 = sbr.rel (%p365) target = $region24
        $region23: #{tpu_custom_call.1} parent=11 // pred_region
          _
        $region24: #{tpu_custom_call.1} parent=11 // pred_fallthru
          _
      $region12: #{tpu_custom_call.1} parent=5 // pred_fallthru
        _
      %p368 = scmp.lt.s32.totalorder %s24, 2
      // Predicated region
      $region25: #{tpu_custom_call.1} parent=5 // pred_check
        %p369 = pneg %p368
      $region26: #{tpu_custom_call.1} parent=5 // pred_check_branch
        %371 = sbr.rel (%p369) target = $region28
      $region27: #{tpu_custom_call.1} parent=5 // pred_region
        // Predicated region
        $region29: #{tpu_custom_call.1} parent=27 // pred_check
          %p372 = pneg %p82
        $region30: #{tpu_custom_call.1} parent=27 // pred_check_branch
          %374 = sbr.rel (%p372) target = $region32
        $region31: #{tpu_custom_call.1} parent=27 // pred_region
          %p375 = scmp.lt.s32.totalorder %s32, 1
          %s376 = scalar_select %p375, %s32, 1
          %s377 = smul.addr %s376, 2
          %s378 = smul.addr %s377, 8
          %s379 = scalar_lea.vmem %s1, %s378
        $region32: #{tpu_custom_call.1} parent=27 // pred_fallthru
          _
        // Predicated region
        $region33: #{tpu_custom_call.1} parent=27 // pred_check
          %p380 = pneg %p108
        $region34: #{tpu_custom_call.1} parent=27 // pred_check_branch
          %382 = sbr.rel (%p380) target = $region36
        $region35: #{tpu_custom_call.1} parent=27 // pred_region
          %p383 = scmp.lt.s32.totalorder %s32, 1
          %s384 = scalar_select %p383, %s32, 1
          %s385 = scalar_lea.vmem %s2, %s384
        $region36: #{tpu_custom_call.1} parent=27 // pred_fallthru
          _
        // Predicated region
        $region37: #{tpu_custom_call.1} parent=27 // pred_check
          %p386 = pneg %p134
        $region38: #{tpu_custom_call.1} parent=27 // pred_check_branch
          %388 = sbr.rel (%p386) target = $region40
        $region39: #{tpu_custom_call.1} parent=27 // pred_region
          %p389 = scmp.lt.s32.totalorder %s32, 1
          %s390 = scalar_select %p389, %s32, 1
          %s391 = smul.addr %s390, 8
          %s392 = smul.addr %s391, 4
          %s393 = scalar_lea.vmem %s3, %s392
        $region40: #{tpu_custom_call.1} parent=27 // pred_fallthru
          _
        // Predicated region
        $region41: #{tpu_custom_call.1} parent=27 // pred_check
          %p394 = pneg %p160
        $region42: #{tpu_custom_call.1} parent=27 // pred_check_branch
          %396 = sbr.rel (%p394) target = $region44
        $region43: #{tpu_custom_call.1} parent=27 // pred_region
          %p397 = scmp.lt.s32.totalorder %s32, 1
          %s398 = scalar_select %p397, %s32, 1
          %s399 = smul.addr %s398, 8
          %s400 = smul.addr %s399, 4
          %s401 = scalar_lea.vmem %s4, %s400
        $region44: #{tpu_custom_call.1} parent=27 // pred_fallthru
          _
        // Predicated region
        $region45: #{tpu_custom_call.1} parent=27 // pred_check
          %p402 = pneg %p186
        $region46: #{tpu_custom_call.1} parent=27 // pred_check_branch
          %404 = sbr.rel (%p402) target = $region48
        $region47: #{tpu_custom_call.1} parent=27 // pred_region
          %p405 = scmp.lt.s32.totalorder %s32, 1
          %s406 = scalar_select %p405, %s32, 1
          %s407 = smul.addr %s406, 8
          %s408 = smul.addr %s407, 4
          %s409 = scalar_lea.vmem %s5, %s408
        $region48: #{tpu_custom_call.1} parent=27 // pred_fallthru
          _
        // Predicated region
        $region49: #{tpu_custom_call.1} parent=27 // pred_check
          %p410 = pneg %p212
        $region50: #{tpu_custom_call.1} parent=27 // pred_check_branch
          %412 = sbr.rel (%p410) target = $region52
        $region51: #{tpu_custom_call.1} parent=27 // pred_region
          %s413 = sand.u32 %s202, 1
          %s414 = scalar_lea.sflag [#allocation4], %s413
          %s415 = sand.u32 %s202, 1
          %s416 = smul.addr %s415, 32
          %s417 = scalar_lea.vmem [#allocation3], %s416
          %419 = vsyncadd %s414, 0
          %s420 = smul.addr %s32, 8
          %s421 = smul.addr %s420, 4
          %s422 = scalar_lea.hbm %s6, %s421
          %s423 = sshll.u32 %s422, 4
          %s424 = int_to_ptr.hbm [resolvable:$true] %s423
          %s425 = sshll.u32 %s417, 4
          %s426 = int_to_ptr.vmem [resolvable:$true] %s425
          %431 = dma.hbm_to_vmem [thread:$0]  %s424, 512, %s426, %s414, 64, 64, 4
        $region52: #{tpu_custom_call.1} parent=27 // pred_fallthru
          _
        // Predicated region
        $region53: #{tpu_custom_call.1} parent=27 // pred_check
          %p432 = pneg %p238
        $region54: #{tpu_custom_call.1} parent=27 // pred_check_branch
          %434 = sbr.rel (%p432) target = $region56
        $region55: #{tpu_custom_call.1} parent=27 // pred_region
          %s435 = sand.u32 %s228, 1
          %s436 = scalar_lea.sflag [#allocation7], %s435
          %s437 = sand.u32 %s228, 1
          %s438 = smul.addr %s437, 32
          %s439 = scalar_lea.vmem [#allocation6], %s438
          %441 = vsyncadd %s436, 0
          %s442 = smul.addr %s32, 8
          %s443 = smul.addr %s442, 4
          %s444 = scalar_lea.hbm %s7, %s443
          %s445 = sshll.u32 %s444, 4
          %s446 = int_to_ptr.hbm [resolvable:$true] %s445
          %s447 = sshll.u32 %s439, 4
          %s448 = int_to_ptr.vmem [resolvable:$true] %s447
          %453 = dma.hbm_to_vmem [thread:$0]  %s446, 512, %s448, %s436, 64, 64, 4
        $region56: #{tpu_custom_call.1} parent=27 // pred_fallthru
          _
        // Predicated region
        $region57: #{tpu_custom_call.1} parent=27 // pred_check
          %p454 = pneg %p264
        $region58: #{tpu_custom_call.1} parent=27 // pred_check_branch
          %456 = sbr.rel (%p454) target = $region60
        $region59: #{tpu_custom_call.1} parent=27 // pred_region
          %p457 = scmp.lt.s32.totalorder %s32, 1
          %s458 = scalar_select %p457, %s32, 1
          %s459 = smul.addr %s458, 16
          %s460 = smul.addr %s459, 4
          %s461 = scalar_lea.vmem %s8, %s460
        $region60: #{tpu_custom_call.1} parent=27 // pred_fallthru
          _
      $region28: #{tpu_custom_call.1} parent=5 // pred_fallthru
        _
      %p462 = scmp.le.s32.totalorder 1, %s24
      %p463 = scmp.lt.s32.totalorder %s24, 3
      %p464 = pnand %p462, %p463
      %p465 = pneg %p464
      // Predicated region
      $region61: #{tpu_custom_call.1} parent=5 // pred_check
        _
      $region62: #{tpu_custom_call.1} parent=5 // pred_check_branch
        %467 = sbr.rel (%p464) target = $region64
      $region63: #{tpu_custom_call.1} parent=5 // pred_region
        %s468 = ssub.s32 %s24, 1
        %s469 = sand.u32 %s205, 1
        %s470 = scalar_lea.sflag [#allocation4], %s469
        %s471 = sand.u32 %s205, 1
        %s472 = smul.addr %s471, 32
        %s473 = scalar_lea.vmem [#allocation3], %s472
        // Predicated region
        $region65: #{tpu_custom_call.1} parent=63 // pred_check
          %p474 = pneg %p218
        $region66: #{tpu_custom_call.1} parent=63 // pred_check_branch
          %476 = sbr.rel (%p474) target = $region68
        $region67: #{tpu_custom_call.1} parent=63 // pred_region
          %478 = dma.done %s470, 512
        $region68: #{tpu_custom_call.1} parent=63 // pred_fallthru
          _
        %s479 = sand.u32 %s231, 1
        %s480 = scalar_lea.sflag [#allocation7], %s479
        %s481 = sand.u32 %s231, 1
        %s482 = smul.addr %s481, 32
        %s483 = scalar_lea.vmem [#allocation6], %s482
        // Predicated region
        $region69: #{tpu_custom_call.1} parent=63 // pred_check
          %p484 = pneg %p244
        $region70: #{tpu_custom_call.1} parent=63 // pred_check_branch
          %486 = sbr.rel (%p484) target = $region72
        $region71: #{tpu_custom_call.1} parent=63 // pred_region
          %488 = dma.done %s480, 512
        $region72: #{tpu_custom_call.1} parent=63 // pred_fallthru
          _
        %s489 = smul.u32 2, %s33
        %p490 = scmp.lt.s32.totalorder %s489, 1
        %s491 = scalar_select %p490, %s489, 1
        %s492 = smul.addr %s491, 8
        %s493 = scalar_lea.vmem %s0, %s492
        %p494 = pneg %p62
        %p495 = pneg %p59
        %p496 = scmp.lt.s32.totalorder %s34, 1
        %s497 = scalar_select %p496, %s34, 1
        %s498 = smul.addr %s497, 2
        %s499 = smul.addr %s498, 8
        %s500 = scalar_lea.vmem %s1, %s499
        %p501 = pneg %p88
        %p502 = pneg %p85
        %p503 = scmp.lt.s32.totalorder %s34, 1
        %s504 = scalar_select %p503, %s34, 1
        %s505 = scalar_lea.vmem %s2, %s504
        %p506 = pneg %p114
        %p507 = pneg %p111
        %p508 = scmp.lt.s32.totalorder %s34, 1
        %s509 = scalar_select %p508, %s34, 1
        %s510 = smul.addr %s509, 8
        %s511 = smul.addr %s510, 4
        %s512 = scalar_lea.vmem %s3, %s511
        %p513 = pneg %p140
        %p514 = pneg %p137
        %p515 = scmp.lt.s32.totalorder %s34, 1
        %s516 = scalar_select %p515, %s34, 1
        %s517 = smul.addr %s516, 8
        %s518 = smul.addr %s517, 4
        %s519 = scalar_lea.vmem %s4, %s518
        %p520 = pneg %p166
        %p521 = pneg %p163
        %p522 = scmp.lt.s32.totalorder %s34, 1
        %s523 = scalar_select %p522, %s34, 1
        %s524 = smul.addr %s523, 8
        %s525 = smul.addr %s524, 4
        %s526 = scalar_lea.vmem %s5, %s525
        %p527 = pneg %p192
        %p528 = pneg %p189
        %s529 = sand.u32 %s205, 1
        %s530 = scalar_lea.sflag [#allocation4], %s529
        %s531 = sand.u32 %s205, 1
        %s532 = smul.addr %s531, 32
        %s533 = scalar_lea.vmem [#allocation3], %s532
        %p534 = pneg %p218
        %p535 = pneg %p215
        %s536 = sand.u32 %s231, 1
        %s537 = scalar_lea.sflag [#allocation7], %s536
        %s538 = sand.u32 %s231, 1
        %s539 = smul.addr %s538, 32
        %s540 = scalar_lea.vmem [#allocation6], %s539
        %p541 = pneg %p244
        %p542 = pneg %p241
        %p543 = scmp.lt.s32.totalorder %s34, 1
        %s544 = scalar_select %p543, %s34, 1
        %s545 = smul.addr %s544, 16
        %s546 = smul.addr %s545, 4
        %s547 = scalar_lea.vmem %s8, %s546
        %p548 = pneg %p270
        %p549 = pneg %p267
        %p550 = pneg %p291
        %p551 = pneg %p288
        %p552 = pneg %p312
        %p553 = pneg %p309
        %p554 = pneg %p338
        %p555 = pneg %p335
        %s556 = smul.u32 2, %s33
        %p557 = scmp.lt.s32.totalorder %s556, 1
        %s558 = scalar_select %p557, %s556, 1
        %s559 = smul.addr %s558, 8
        %s560 = scalar_lea.vmem %s0, %s559
        %s561 = smul.u32 2, %s33
        %p562 = scmp.lt.s32.totalorder %s34, 1
        %s563 = scalar_select %p562, %s34, 1
        %s564 = smul.addr %s563, 2
        %s565 = smul.addr %s564, 8
        %s566 = scalar_lea.vmem %s1, %s565
        %p567 = scmp.lt.s32.totalorder %s34, 1
        %s568 = scalar_select %p567, %s34, 1
        %s569 = scalar_lea.vmem %s2, %s568
        %p570 = scmp.lt.s32.totalorder %s34, 1
        %s571 = scalar_select %p570, %s34, 1
        %s572 = smul.addr %s571, 8
        %s573 = smul.addr %s572, 4
        %s574 = scalar_lea.vmem %s3, %s573
        %p575 = scmp.lt.s32.totalorder %s34, 1
        %s576 = scalar_select %p575, %s34, 1
        %s577 = smul.addr %s576, 8
        %s578 = smul.addr %s577, 4
        %s579 = scalar_lea.vmem %s4, %s578
        %p580 = scmp.lt.s32.totalorder %s34, 1
        %s581 = scalar_select %p580, %s34, 1
        %s582 = smul.addr %s581, 8
        %s583 = smul.addr %s582, 4
        %s584 = scalar_lea.vmem %s5, %s583
        %p585 = scmp.lt.s32.totalorder %s34, 1
        %s586 = scalar_select %p585, %s34, 1
        %s587 = smul.addr %s586, 16
        %s588 = smul.addr %s587, 4
        %s589 = scalar_lea.vmem %s8, %s588
        %s590 = smul.u32 2, %s33
        %p592 = scmp.eq.s32.totalorder %s34, 0
        // Predicated region
        $region73: #{tpu_custom_call.1} parent=63 // pred_check
          %p593 = pneg %p592
        $region74: #{tpu_custom_call.1} parent=63 // pred_check_branch
          %595 = sbr.rel (%p593) target = $region76
        $region75: #{tpu_custom_call.1} parent=63 // pred_region
          %v596 = vld [vmem:[%s560] sm:$0xff]
          %v597 = vld [vmem:[%s560 + $0x8] sm:$0xff]
          %vm598 = vcmask 523264
          %599 = vst.msk [vmem:[#allocation2] sm:$0xff] %vm598, %v596
          %600 = vst.msk [vmem:[#allocation2 + $0x8] sm:$0xff] %vm598, %v597
        $region76: #{tpu_custom_call.1} parent=63 // pred_fallthru
          _
        %v601 = vld [vmem:[#allocation2] sm:$0xff]
        %v602 = vld [vmem:[#allocation2 + $0x8] sm:$0xff]
        %v603 = vld [vmem:[%s566] sm:$0xff]
        %v604 = vld [vmem:[%s566 + $0x8] sm:$0x1]
        %v605 = vld [vmem:[%s569] sm:$0x1]
        %v606 = vlaneseq
        %v607 = vshrl.u32 %v606, 7
        %v608 = vlaneseq
        %v609 = vand.u32 %v608, 127
        %vm610 = vcmp.gt.s32.totalorder %v609, %v607
        %v611 = vsel %vm610, -1e+30, 0.0
        %vm612 = vcmask 523264
        %v613 = vsel %vm612, %v601, 0.0
        %614 = vadd.xlane.f32.xlu0 %v613
        %v615 = vpop.xlane.xlu0 %614
        %v616 = vsel %vm612, %v602, 0.0
        %617 = vadd.xlane.f32.xlu0 %v616
        %v618 = vpop.xlane.xlu0 %617
        %v619 = vrcp.pop 64.0
        %v620 = vmul.f32 64.0, %v619
        %v621 = vsub.f32 1.0, %v620
        %v622 = vmul.f32 %v619, %v621
        %v623 = vadd.f32 %v619, %v622
        %vm624 = vweird.f32 %v619
        %v625 = vsel %vm624, %v619, %v623
        %v626 = vmul.f32 %v615, %v625
        %v627 = vmul.f32 %v618, %v625
        %v628 = vsub.f32 %v601, %v626
        %v629 = vsub.f32 %v602, %v627
        %v630 = vmul.f32 %v628, %v628
        %v631 = vmul.f32 %v629, %v629
        %v632 = vsel %vm612, %v630, 0.0
        %633 = vadd.xlane.f32.xlu0 %v632
        %v634 = vpop.xlane.xlu0 %633
        %v635 = vsel %vm612, %v631, 0.0
        %636 = vadd.xlane.f32.xlu0 %v635
        %v637 = vpop.xlane.xlu0 %636
        %v638 = vmul.f32 %v634, %v625
        %v639 = vmul.f32 %v637, %v625
        %v640 = vadd.f32 %v638, 1e-05
        %v641 = vadd.f32 %v639, 1e-05
        %v642 = vrsqrt.pop %v640
        %v643 = vmul.f32 %v642, %v640
        %v644 = vmul.f32 %v643, %v642
        %v645 = vmul.f32 0.5, %v644
        %v646 = vsub.f32 1.5, %v645
        %v647 = vmul.f32 %v642, %v646
        %vm648 = vweird.f32 %v640
        %vm649 = vweird.f32 %v642
        %vm650 = vmor %vm648, %vm649
        %v651 = vsel %vm650, %v642, %v647
        %v652 = vrsqrt.pop %v641
        %v653 = vmul.f32 %v652, %v641
        %v654 = vmul.f32 %v653, %v652
        %v655 = vmul.f32 0.5, %v654
        %v656 = vsub.f32 1.5, %v655
        %v657 = vmul.f32 %v652, %v656
        %vm658 = vweird.f32 %v641
        %vm659 = vweird.f32 %v652
        %vm660 = vmor %vm658, %vm659
        %v661 = vsel %vm660, %v652, %v657
        %v662 = vmul.f32 %v628, %v651
        %v663 = vmul.f32 %v629, %v661
        %v664 = vperm.slane %v603, 0
        %v665 = vmul.f32 %v662, %v664
        %v666 = vmul.f32 %v663, %v664
        %v667 = vperm.slane %v603, 1
        %v668 = vadd.f32 %v665, %v667
        %v669 = vadd.f32 %v666, %v667
        %v670 = vpack.c.bf16 %v668, %v668
        %v671 = vpack.c.bf16 %v669, %v669
        %v672 = vld [vmem:[%s574] sm:$0xf]
        %v673 = vld [vmem:[%s574 + $0x4] sm:$0xf]
        %v674 = vld [vmem:[%s574 + $0x8] sm:$0xf]
        %v675 = vld [vmem:[%s574 + $0xc] sm:$0xf]
        %v676 = vld [vmem:[%s574 + $0x10] sm:$0xf]
        %v677 = vld [vmem:[%s574 + $0x14] sm:$0xf]
        %v678 = vld [vmem:[%s574 + $0x18] sm:$0xf]
        %v679 = vld [vmem:[%s574 + $0x1c] sm:$0xf]
        %v680 = vperm.slane %v603, 2
        %v683 = vunpack.c.l.b16 %v670
        %v684 = vunpack.c.l.b16 %v671
        %v685 = vpack.c.b16 %v684, %v683
        %v694 = vunpack.c.l.b16 %v672
        %v695 = vunpack.c.l.b16 %v673
        %v696 = vunpack.c.l.b16 %v674
        %v697 = vunpack.c.l.b16 %v675
        %v698 = vunpack.c.l.b16 %v676
        %v699 = vunpack.c.l.b16 %v677
        %v700 = vunpack.c.l.b16 %v678
        %v701 = vunpack.c.l.b16 %v679
        %v702 = vpack.c.b16 %v695, %v694
        %v703 = vpack.c.b16 %v697, %v696
        %v704 = vpack.c.b16 %v699, %v698
        %v705 = vpack.c.b16 %v701, %v700
        %v711 = vsel %vm612, %v685, 0
        %713 = vmatpush.bf16.msra.mxu0 0
        %714 = vmatpush.bf16.msra.mxu0 0
        %715 = vmatpush.bf16.msra.mxu0 0
        %716 = vmatpush.bf16.msra.mxu0 0
        %717 = vmatpush.bf16.msra.mxu0 %v705
        %718 = vmatpush.bf16.msra.mxu0 %v704
        %719 = vmatpush.bf16.msra.mxu0 %v703
        %720 = vmatpush.bf16.msra.mxu0 %v702
        %721 = vmatmul.bf16.gmra.mxu0 %v711
        %v722 = vpop.f32.mrf.mxu0
        %v723 = vadd.f32 %v680, %v722
        %v724 = vpop.f32.mrf.mxu0
        %v725 = vadd.f32 %v680, %v724
        %726 = vdwg.mxu0
        %v727 = vld [vmem:[%s579] sm:$0xf]
        %v728 = vld [vmem:[%s579 + $0x4] sm:$0xf]
        %v729 = vld [vmem:[%s579 + $0x8] sm:$0xf]
        %v730 = vld [vmem:[%s579 + $0xc] sm:$0xf]
        %v731 = vld [vmem:[%s579 + $0x10] sm:$0xf]
        %v732 = vld [vmem:[%s579 + $0x14] sm:$0xf]
        %v733 = vld [vmem:[%s579 + $0x18] sm:$0xf]
        %v734 = vld [vmem:[%s579 + $0x1c] sm:$0xf]
        %v735 = vperm.slane %v603, 3
        %v744 = vunpack.c.l.b16 %v727
        %v745 = vunpack.c.l.b16 %v728
        %v746 = vunpack.c.l.b16 %v729
        %v747 = vunpack.c.l.b16 %v730
        %v748 = vunpack.c.l.b16 %v731
        %v749 = vunpack.c.l.b16 %v732
        %v750 = vunpack.c.l.b16 %v733
        %v751 = vunpack.c.l.b16 %v734
        %v752 = vpack.c.b16 %v745, %v744
        %v753 = vpack.c.b16 %v747, %v746
        %v754 = vpack.c.b16 %v749, %v748
        %v755 = vpack.c.b16 %v751, %v750
        %760 = vmatpush.bf16.msra.mxu0 0
        %761 = vmatpush.bf16.msra.mxu0 0
        %762 = vmatpush.bf16.msra.mxu0 0
        %763 = vmatpush.bf16.msra.mxu0 0
        %764 = vmatpush.bf16.msra.mxu0 %v755
        %765 = vmatpush.bf16.msra.mxu0 %v754
        %766 = vmatpush.bf16.msra.mxu0 %v753
        %767 = vmatpush.bf16.msra.mxu0 %v752
        %768 = vmatmul.bf16.gmra.mxu0 %v711
        %v769 = vpop.f32.mrf.mxu0
        %v770 = vadd.f32 %v735, %v769
        %v771 = vpop.f32.mrf.mxu0
        %v772 = vadd.f32 %v735, %v771
        %773 = vdwg.mxu0
        %v774 = vld [vmem:[%s584] sm:$0xf]
        %v775 = vld [vmem:[%s584 + $0x4] sm:$0xf]
        %v776 = vld [vmem:[%s584 + $0x8] sm:$0xf]
        %v777 = vld [vmem:[%s584 + $0xc] sm:$0xf]
        %v778 = vld [vmem:[%s584 + $0x10] sm:$0xf]
        %v779 = vld [vmem:[%s584 + $0x14] sm:$0xf]
        %v780 = vld [vmem:[%s584 + $0x18] sm:$0xf]
        %v781 = vld [vmem:[%s584 + $0x1c] sm:$0xf]
        %v782 = vperm.slane %v603, 4
        %v791 = vunpack.c.l.b16 %v774
        %v792 = vunpack.c.l.b16 %v775
        %v793 = vunpack.c.l.b16 %v776
        %v794 = vunpack.c.l.b16 %v777
        %v795 = vunpack.c.l.b16 %v778
        %v796 = vunpack.c.l.b16 %v779
        %v797 = vunpack.c.l.b16 %v780
        %v798 = vunpack.c.l.b16 %v781
        %v799 = vpack.c.b16 %v792, %v791
        %v800 = vpack.c.b16 %v794, %v793
        %v801 = vpack.c.b16 %v796, %v795
        %v802 = vpack.c.b16 %v798, %v797
        %807 = vmatpush.bf16.msra.mxu0 0
        %808 = vmatpush.bf16.msra.mxu0 0
        %809 = vmatpush.bf16.msra.mxu0 0
        %810 = vmatpush.bf16.msra.mxu0 0
        %811 = vmatpush.bf16.msra.mxu0 %v802
        %812 = vmatpush.bf16.msra.mxu0 %v801
        %813 = vmatpush.bf16.msra.mxu0 %v800
        %814 = vmatpush.bf16.msra.mxu0 %v799
        %815 = vmatmul.bf16.gmra.mxu0 %v711
        %v816 = vpop.f32.mrf.mxu0
        %v817 = vadd.f32 %v782, %v816
        %v818 = vpop.f32.mrf.mxu0
        %v819 = vadd.f32 %v782, %v818
        %820 = vdwg.mxu0
        %821 = vxpose.xlu0.b32.start [1/16] %v723, 128
        %822 = vxpose.xlu0.b32.cont [2/16] 0.0, 128
        %823 = vxpose.xlu0.b32.cont [3/16] 0.0, 128
        %824 = vxpose.xlu0.b32.cont [4/16] 0.0, 128
        %825 = vxpose.xlu0.b32.cont [5/16] 0.0, 128
        %826 = vxpose.xlu0.b32.cont [6/16] 0.0, 128
        %827 = vxpose.xlu0.b32.cont [7/16] 0.0, 128
        %828 = vxpose.xlu0.b32.cont [8/16] 0.0, 128
        %829 = vxpose.xlu0.b32.cont [9/16] 0.0, 128
        %830 = vxpose.xlu0.b32.cont [10/16] 0.0, 128
        %831 = vxpose.xlu0.b32.cont [11/16] 0.0, 128
        %832 = vxpose.xlu0.b32.cont [12/16] 0.0, 128
        %833 = vxpose.xlu0.b32.cont [13/16] 0.0, 128
        %834 = vxpose.xlu0.b32.cont [14/16] 0.0, 128
        %835 = vxpose.xlu0.b32.cont [15/16] 0.0, 128
        %836 = vxpose.xlu0.b32.end [16/16] 0.0, 128
        %v837 = vpop.trf.xlu0
        %v838 = vpop.trf.xlu0
        %v839 = vpop.trf.xlu0
        %v840 = vpop.trf.xlu0
        %v841 = vpop.trf.xlu0
        %v842 = vpop.trf.xlu0
        %v843 = vpop.trf.xlu0
        %v844 = vpop.trf.xlu0
        %v845 = vpop.trf.xlu0
        %v846 = vpop.trf.xlu0
        %v847 = vpop.trf.xlu0
        %v848 = vpop.trf.xlu0
        %v849 = vpop.trf.xlu0
        %v850 = vpop.trf.xlu0
        %v851 = vpop.trf.xlu0
        %v852 = vpop.trf.xlu0
        %853 = vxpose.xlu0.b32.start [1/16] %v725, 128
        %854 = vxpose.xlu0.b32.cont [2/16] 0.0, 128
        %855 = vxpose.xlu0.b32.cont [3/16] 0.0, 128
        %856 = vxpose.xlu0.b32.cont [4/16] 0.0, 128
        %857 = vxpose.xlu0.b32.cont [5/16] 0.0, 128
        %858 = vxpose.xlu0.b32.cont [6/16] 0.0, 128
        %859 = vxpose.xlu0.b32.cont [7/16] 0.0, 128
        %860 = vxpose.xlu0.b32.cont [8/16] 0.0, 128
        %861 = vxpose.xlu0.b32.cont [9/16] 0.0, 128
        %862 = vxpose.xlu0.b32.cont [10/16] 0.0, 128
        %863 = vxpose.xlu0.b32.cont [11/16] 0.0, 128
        %864 = vxpose.xlu0.b32.cont [12/16] 0.0, 128
        %865 = vxpose.xlu0.b32.cont [13/16] 0.0, 128
        %866 = vxpose.xlu0.b32.cont [14/16] 0.0, 128
        %867 = vxpose.xlu0.b32.cont [15/16] 0.0, 128
        %868 = vxpose.xlu0.b32.end [16/16] 0.0, 128
        %v869 = vpop.trf.xlu0
        %v870 = vpop.trf.xlu0
        %v871 = vpop.trf.xlu0
        %v872 = vpop.trf.xlu0
        %v873 = vpop.trf.xlu0
        %v874 = vpop.trf.xlu0
        %v875 = vpop.trf.xlu0
        %v876 = vpop.trf.xlu0
        %v877 = vpop.trf.xlu0
        %v878 = vpop.trf.xlu0
        %v879 = vpop.trf.xlu0
        %v880 = vpop.trf.xlu0
        %v881 = vpop.trf.xlu0
        %v882 = vpop.trf.xlu0
        %v883 = vpop.trf.xlu0
        %v884 = vpop.trf.xlu0
        %v885 = vpack.c.bf16 %v838, %v837
        %v886 = vpack.c.bf16 %v840, %v839
        %v887 = vpack.c.bf16 %v842, %v841
        %v888 = vpack.c.bf16 %v844, %v843
        %v889 = vpack.c.bf16 %v870, %v869
        %v890 = vpack.c.bf16 %v872, %v871
        %v891 = vpack.c.bf16 %v874, %v873
        %v892 = vpack.c.bf16 %v876, %v875
        %893 = vxpose.xlu0.c.b16.start [1/8] %v885, 128
        %894 = vxpose.xlu0.c.b16.cont [2/8] 0, 128
        %895 = vxpose.xlu0.c.b16.cont [3/8] 0, 128
        %896 = vxpose.xlu0.c.b16.cont [4/8] 0, 128
        %897 = vxpose.xlu0.c.b16.cont [5/8] 0, 128
        %898 = vxpose.xlu0.c.b16.cont [6/8] 0, 128
        %899 = vxpose.xlu0.c.b16.cont [7/8] 0, 128
        %900 = vxpose.xlu0.c.b16.end [8/8] 0, 128
        %v901 = vpop.trf.xlu0
        %v902 = vpop.trf.xlu0
        %v903 = vpop.trf.xlu0
        %v904 = vpop.trf.xlu0
        %v905 = vpop.trf.xlu0
        %v906 = vpop.trf.xlu0
        %v907 = vpop.trf.xlu0
        %v908 = vpop.trf.xlu0
        %909 = vxpose.xlu0.c.b16.start [1/8] %v886, 128
        %910 = vxpose.xlu0.c.b16.cont [2/8] 0, 128
        %911 = vxpose.xlu0.c.b16.cont [3/8] 0, 128
        %912 = vxpose.xlu0.c.b16.cont [4/8] 0, 128
        %913 = vxpose.xlu0.c.b16.cont [5/8] 0, 128
        %914 = vxpose.xlu0.c.b16.cont [6/8] 0, 128
        %915 = vxpose.xlu0.c.b16.cont [7/8] 0, 128
        %916 = vxpose.xlu0.c.b16.end [8/8] 0, 128
        %v917 = vpop.trf.xlu0
        %v918 = vpop.trf.xlu0
        %v919 = vpop.trf.xlu0
        %v920 = vpop.trf.xlu0
        %v921 = vpop.trf.xlu0
        %v922 = vpop.trf.xlu0
        %v923 = vpop.trf.xlu0
        %v924 = vpop.trf.xlu0
        %925 = vxpose.xlu0.c.b16.start [1/8] %v887, 128
        %926 = vxpose.xlu0.c.b16.cont [2/8] 0, 128
        %927 = vxpose.xlu0.c.b16.cont [3/8] 0, 128
        %928 = vxpose.xlu0.c.b16.cont [4/8] 0, 128
        %929 = vxpose.xlu0.c.b16.cont [5/8] 0, 128
        %930 = vxpose.xlu0.c.b16.cont [6/8] 0, 128
        %931 = vxpose.xlu0.c.b16.cont [7/8] 0, 128
        %932 = vxpose.xlu0.c.b16.end [8/8] 0, 128
        %v933 = vpop.trf.xlu0
        %v934 = vpop.trf.xlu0
        %v935 = vpop.trf.xlu0
        %v936 = vpop.trf.xlu0
        %v937 = vpop.trf.xlu0
        %v938 = vpop.trf.xlu0
        %v939 = vpop.trf.xlu0
        %v940 = vpop.trf.xlu0
        %941 = vxpose.xlu0.c.b16.start [1/8] %v888, 128
        %942 = vxpose.xlu0.c.b16.cont [2/8] 0, 128
        %943 = vxpose.xlu0.c.b16.cont [3/8] 0, 128
        %944 = vxpose.xlu0.c.b16.cont [4/8] 0, 128
        %945 = vxpose.xlu0.c.b16.cont [5/8] 0, 128
        %946 = vxpose.xlu0.c.b16.cont [6/8] 0, 128
        %947 = vxpose.xlu0.c.b16.cont [7/8] 0, 128
        %948 = vxpose.xlu0.c.b16.end [8/8] 0, 128
        %v949 = vpop.trf.xlu0
        %v950 = vpop.trf.xlu0
        %v951 = vpop.trf.xlu0
        %v952 = vpop.trf.xlu0
        %v953 = vpop.trf.xlu0
        %v954 = vpop.trf.xlu0
        %v955 = vpop.trf.xlu0
        %v956 = vpop.trf.xlu0
        %957 = vxpose.xlu0.c.b16.start [1/8] %v889, 128
        %958 = vxpose.xlu0.c.b16.cont [2/8] 0, 128
        %959 = vxpose.xlu0.c.b16.cont [3/8] 0, 128
        %960 = vxpose.xlu0.c.b16.cont [4/8] 0, 128
        %961 = vxpose.xlu0.c.b16.cont [5/8] 0, 128
        %962 = vxpose.xlu0.c.b16.cont [6/8] 0, 128
        %963 = vxpose.xlu0.c.b16.cont [7/8] 0, 128
        %964 = vxpose.xlu0.c.b16.end [8/8] 0, 128
        %v965 = vpop.trf.xlu0
        %v966 = vpop.trf.xlu0
        %v967 = vpop.trf.xlu0
        %v968 = vpop.trf.xlu0
        %v969 = vpop.trf.xlu0
        %v970 = vpop.trf.xlu0
        %v971 = vpop.trf.xlu0
        %v972 = vpop.trf.xlu0
        %973 = vxpose.xlu0.c.b16.start [1/8] %v890, 128
        %974 = vxpose.xlu0.c.b16.cont [2/8] 0, 128
        %975 = vxpose.xlu0.c.b16.cont [3/8] 0, 128
        %976 = vxpose.xlu0.c.b16.cont [4/8] 0, 128
        %977 = vxpose.xlu0.c.b16.cont [5/8] 0, 128
        %978 = vxpose.xlu0.c.b16.cont [6/8] 0, 128
        %979 = vxpose.xlu0.c.b16.cont [7/8] 0, 128
        %980 = vxpose.xlu0.c.b16.end [8/8] 0, 128
        %v981 = vpop.trf.xlu0
        %v982 = vpop.trf.xlu0
        %v983 = vpop.trf.xlu0
        %v984 = vpop.trf.xlu0
        %v985 = vpop.trf.xlu0
        %v986 = vpop.trf.xlu0
        %v987 = vpop.trf.xlu0
        %v988 = vpop.trf.xlu0
        %989 = vxpose.xlu0.c.b16.start [1/8] %v891, 128
        %990 = vxpose.xlu0.c.b16.cont [2/8] 0, 128
        %991 = vxpose.xlu0.c.b16.cont [3/8] 0, 128
        %992 = vxpose.xlu0.c.b16.cont [4/8] 0, 128
        %993 = vxpose.xlu0.c.b16.cont [5/8] 0, 128
        %994 = vxpose.xlu0.c.b16.cont [6/8] 0, 128
        %995 = vxpose.xlu0.c.b16.cont [7/8] 0, 128
        %996 = vxpose.xlu0.c.b16.end [8/8] 0, 128
        %v997 = vpop.trf.xlu0
        %v998 = vpop.trf.xlu0
        %v999 = vpop.trf.xlu0
        %v1000 = vpop.trf.xlu0
        %v1001 = vpop.trf.xlu0
        %v1002 = vpop.trf.xlu0
        %v1003 = vpop.trf.xlu0
        %v1004 = vpop.trf.xlu0
        %1005 = vxpose.xlu0.c.b16.start [1/8] %v892, 128
        %1006 = vxpose.xlu0.c.b16.cont [2/8] 0, 128
        %1007 = vxpose.xlu0.c.b16.cont [3/8] 0, 128
        %1008 = vxpose.xlu0.c.b16.cont [4/8] 0, 128
        %1009 = vxpose.xlu0.c.b16.cont [5/8] 0, 128
        %1010 = vxpose.xlu0.c.b16.cont [6/8] 0, 128
        %1011 = vxpose.xlu0.c.b16.cont [7/8] 0, 128
        %1012 = vxpose.xlu0.c.b16.end [8/8] 0, 128
        %v1013 = vpop.trf.xlu0
        %v1014 = vpop.trf.xlu0
        %v1015 = vpop.trf.xlu0
        %v1016 = vpop.trf.xlu0
        %v1017 = vpop.trf.xlu0
        %v1018 = vpop.trf.xlu0
        %v1019 = vpop.trf.xlu0
        %v1020 = vpop.trf.xlu0
        %1021 = vxpose.xlu0.b32.start [1/16] %v770, 128
        %1022 = vxpose.xlu0.b32.cont [2/16] 0.0, 128
        %1023 = vxpose.xlu0.b32.cont [3/16] 0.0, 128
        %1024 = vxpose.xlu0.b32.cont [4/16] 0.0, 128
        %1025 = vxpose.xlu0.b32.cont [5/16] 0.0, 128
        %1026 = vxpose.xlu0.b32.cont [6/16] 0.0, 128
        %1027 = vxpose.xlu0.b32.cont [7/16] 0.0, 128
        %1028 = vxpose.xlu0.b32.cont [8/16] 0.0, 128
        %1029 = vxpose.xlu0.b32.cont [9/16] 0.0, 128
        %1030 = vxpose.xlu0.b32.cont [10/16] 0.0, 128
        %1031 = vxpose.xlu0.b32.cont [11/16] 0.0, 128
        %1032 = vxpose.xlu0.b32.cont [12/16] 0.0, 128
        %1033 = vxpose.xlu0.b32.cont [13/16] 0.0, 128
        %1034 = vxpose.xlu0.b32.cont [14/16] 0.0, 128
        %1035 = vxpose.xlu0.b32.cont [15/16] 0.0, 128
        %1036 = vxpose.xlu0.b32.end [16/16] 0.0, 128
        %v1037 = vpop.trf.xlu0
        %v1038 = vpop.trf.xlu0
        %v1039 = vpop.trf.xlu0
        %v1040 = vpop.trf.xlu0
        %v1041 = vpop.trf.xlu0
        %v1042 = vpop.trf.xlu0
        %v1043 = vpop.trf.xlu0
        %v1044 = vpop.trf.xlu0
        %v1045 = vpop.trf.xlu0
        %v1046 = vpop.trf.xlu0
        %v1047 = vpop.trf.xlu0
        %v1048 = vpop.trf.xlu0
        %v1049 = vpop.trf.xlu0
        %v1050 = vpop.trf.xlu0
        %v1051 = vpop.trf.xlu0
        %v1052 = vpop.trf.xlu0
        %1053 = vxpose.xlu0.b32.start [1/16] %v772, 128
        %1054 = vxpose.xlu0.b32.cont [2/16] 0.0, 128
        %1055 = vxpose.xlu0.b32.cont [3/16] 0.0, 128
        %1056 = vxpose.xlu0.b32.cont [4/16] 0.0, 128
        %1057 = vxpose.xlu0.b32.cont [5/16] 0.0, 128
        %1058 = vxpose.xlu0.b32.cont [6/16] 0.0, 128
        %1059 = vxpose.xlu0.b32.cont [7/16] 0.0, 128
        %1060 = vxpose.xlu0.b32.cont [8/16] 0.0, 128
        %1061 = vxpose.xlu0.b32.cont [9/16] 0.0, 128
        %1062 = vxpose.xlu0.b32.cont [10/16] 0.0, 128
        %1063 = vxpose.xlu0.b32.cont [11/16] 0.0, 128
        %1064 = vxpose.xlu0.b32.cont [12/16] 0.0, 128
        %1065 = vxpose.xlu0.b32.cont [13/16] 0.0, 128
        %1066 = vxpose.xlu0.b32.cont [14/16] 0.0, 128
        %1067 = vxpose.xlu0.b32.cont [15/16] 0.0, 128
        %1068 = vxpose.xlu0.b32.end [16/16] 0.0, 128
        %v1069 = vpop.trf.xlu0
        %v1070 = vpop.trf.xlu0
        %v1071 = vpop.trf.xlu0
        %v1072 = vpop.trf.xlu0
        %v1073 = vpop.trf.xlu0
        %v1074 = vpop.trf.xlu0
        %v1075 = vpop.trf.xlu0
        %v1076 = vpop.trf.xlu0
        %v1077 = vpop.trf.xlu0
        %v1078 = vpop.trf.xlu0
        %v1079 = vpop.trf.xlu0
        %v1080 = vpop.trf.xlu0
        %v1081 = vpop.trf.xlu0
        %v1082 = vpop.trf.xlu0
        %v1083 = vpop.trf.xlu0
        %v1084 = vpop.trf.xlu0
        %v1085 = vpack.c.bf16 %v1037, %v1037
        %v1086 = vpack.c.bf16 %v1038, %v1038
        %v1087 = vpack.c.bf16 %v1039, %v1039
        %v1088 = vpack.c.bf16 %v1040, %v1040
        %v1089 = vpack.c.bf16 %v1041, %v1041
        %v1090 = vpack.c.bf16 %v1042, %v1042
        %v1091 = vpack.c.bf16 %v1043, %v1043
        %v1092 = vpack.c.bf16 %v1044, %v1044
        %v1093 = vpack.c.bf16 %v1069, %v1069
        %v1094 = vpack.c.bf16 %v1070, %v1070
        %v1095 = vpack.c.bf16 %v1071, %v1071
        %v1096 = vpack.c.bf16 %v1072, %v1072
        %v1097 = vpack.c.bf16 %v1073, %v1073
        %v1098 = vpack.c.bf16 %v1074, %v1074
        %v1099 = vpack.c.bf16 %v1075, %v1075
        %v1100 = vpack.c.bf16 %v1076, %v1076
        %1101 = vxpose.xlu0.b32.start [1/16] %v817, 128
        %1102 = vxpose.xlu0.b32.cont [2/16] 0.0, 128
        %1103 = vxpose.xlu0.b32.cont [3/16] 0.0, 128
        %1104 = vxpose.xlu0.b32.cont [4/16] 0.0, 128
        %1105 = vxpose.xlu0.b32.cont [5/16] 0.0, 128
        %1106 = vxpose.xlu0.b32.cont [6/16] 0.0, 128
        %1107 = vxpose.xlu0.b32.cont [7/16] 0.0, 128
        %1108 = vxpose.xlu0.b32.cont [8/16] 0.0, 128
        %1109 = vxpose.xlu0.b32.cont [9/16] 0.0, 128
        %1110 = vxpose.xlu0.b32.cont [10/16] 0.0, 128
        %1111 = vxpose.xlu0.b32.cont [11/16] 0.0, 128
        %1112 = vxpose.xlu0.b32.cont [12/16] 0.0, 128
        %1113 = vxpose.xlu0.b32.cont [13/16] 0.0, 128
        %1114 = vxpose.xlu0.b32.cont [14/16] 0.0, 128
        %1115 = vxpose.xlu0.b32.cont [15/16] 0.0, 128
        %1116 = vxpose.xlu0.b32.end [16/16] 0.0, 128
        %v1117 = vpop.trf.xlu0
        %v1118 = vpop.trf.xlu0
        %v1119 = vpop.trf.xlu0
        %v1120 = vpop.trf.xlu0
        %v1121 = vpop.trf.xlu0
        %v1122 = vpop.trf.xlu0
        %v1123 = vpop.trf.xlu0
        %v1124 = vpop.trf.xlu0
        %v1125 = vpop.trf.xlu0
        %v1126 = vpop.trf.xlu0
        %v1127 = vpop.trf.xlu0
        %v1128 = vpop.trf.xlu0
        %v1129 = vpop.trf.xlu0
        %v1130 = vpop.trf.xlu0
        %v1131 = vpop.trf.xlu0
        %v1132 = vpop.trf.xlu0
        %1133 = vxpose.xlu0.b32.start [1/16] %v819, 128
        %1134 = vxpose.xlu0.b32.cont [2/16] 0.0, 128
        %1135 = vxpose.xlu0.b32.cont [3/16] 0.0, 128
        %1136 = vxpose.xlu0.b32.cont [4/16] 0.0, 128
        %1137 = vxpose.xlu0.b32.cont [5/16] 0.0, 128
        %1138 = vxpose.xlu0.b32.cont [6/16] 0.0, 128
        %1139 = vxpose.xlu0.b32.cont [7/16] 0.0, 128
        %1140 = vxpose.xlu0.b32.cont [8/16] 0.0, 128
        %1141 = vxpose.xlu0.b32.cont [9/16] 0.0, 128
        %1142 = vxpose.xlu0.b32.cont [10/16] 0.0, 128
        %1143 = vxpose.xlu0.b32.cont [11/16] 0.0, 128
        %1144 = vxpose.xlu0.b32.cont [12/16] 0.0, 128
        %1145 = vxpose.xlu0.b32.cont [13/16] 0.0, 128
        %1146 = vxpose.xlu0.b32.cont [14/16] 0.0, 128
        %1147 = vxpose.xlu0.b32.cont [15/16] 0.0, 128
        %1148 = vxpose.xlu0.b32.end [16/16] 0.0, 128
        %v1149 = vpop.trf.xlu0
        %v1150 = vpop.trf.xlu0
        %v1151 = vpop.trf.xlu0
        %v1152 = vpop.trf.xlu0
        %v1153 = vpop.trf.xlu0
        %v1154 = vpop.trf.xlu0
        %v1155 = vpop.trf.xlu0
        %v1156 = vpop.trf.xlu0
        %v1157 = vpop.trf.xlu0
        %v1158 = vpop.trf.xlu0
        %v1159 = vpop.trf.xlu0
        %v1160 = vpop.trf.xlu0
        %v1161 = vpop.trf.xlu0
        %v1162 = vpop.trf.xlu0
        %v1163 = vpop.trf.xlu0
        %v1164 = vpop.trf.xlu0
        %v1165 = vpack.c.bf16 %v1117, %v1117
        %v1166 = vpack.c.bf16 %v1118, %v1118
        %v1167 = vpack.c.bf16 %v1119, %v1119
        %v1168 = vpack.c.bf16 %v1120, %v1120
        %v1169 = vpack.c.bf16 %v1121, %v1121
        %v1170 = vpack.c.bf16 %v1122, %v1122
        %v1171 = vpack.c.bf16 %v1123, %v1123
        %v1172 = vpack.c.bf16 %v1124, %v1124
        %v1173 = vpack.c.bf16 %v1149, %v1149
        %v1174 = vpack.c.bf16 %v1150, %v1150
        %v1175 = vpack.c.bf16 %v1151, %v1151
        %v1176 = vpack.c.bf16 %v1152, %v1152
        %v1177 = vpack.c.bf16 %v1153, %v1153
        %v1178 = vpack.c.bf16 %v1154, %v1154
        %v1179 = vpack.c.bf16 %v1155, %v1155
        %v1180 = vpack.c.bf16 %v1156, %v1156
        %v1183 = vunpack.c.l.b16 %v1085
        %v1184 = vunpack.c.l.b16 %v1086
        %v1185 = vpack.c.b16 %v1184, %v1183
        %vm1187 = vcmask 130048
        %v1189 = vsel %vm1187, %v901, 0
        %1191 = vmatpush.bf16.msra.mxu0 0
        %1192 = vmatpush.bf16.msra.mxu0 0
        %1193 = vmatpush.bf16.msra.mxu0 0
        %1194 = vmatpush.bf16.msra.mxu0 0
        %1195 = vmatpush.bf16.msra.mxu0 0
        %1196 = vmatpush.bf16.msra.mxu0 0
        %1197 = vmatpush.bf16.msra.mxu0 0
        %1198 = vmatpush.bf16.msra.mxu0 %v1185
        %1199 = vmatmul.bf16.gmra.mxu0 %v1189
        %v1200 = vpop.f32.mrf.mxu0
        %v1201 = vadd.f32 %v611, %v1200
        %v1202 = vpop.f32.mrf.mxu0
        %1203 = vdwg.mxu0
        %v1206 = vunpack.c.l.b16 %v1087
        %v1207 = vunpack.c.l.b16 %v1088
        %v1208 = vpack.c.b16 %v1207, %v1206
        %v1211 = vsel %vm1187, %v917, 0
        %1213 = vmatpush.bf16.msra.mxu0 0
        %1214 = vmatpush.bf16.msra.mxu0 0
        %1215 = vmatpush.bf16.msra.mxu0 0
        %1216 = vmatpush.bf16.msra.mxu0 0
        %1217 = vmatpush.bf16.msra.mxu0 0
        %1218 = vmatpush.bf16.msra.mxu0 0
        %1219 = vmatpush.bf16.msra.mxu0 0
        %1220 = vmatpush.bf16.msra.mxu0 %v1208
        %1221 = vmatmul.bf16.gmra.mxu0 %v1211
        %v1222 = vpop.f32.mrf.mxu0
        %v1223 = vadd.f32 %v611, %v1222
        %v1224 = vpop.f32.mrf.mxu0
        %1225 = vdwg.mxu0
        %v1228 = vunpack.c.l.b16 %v1089
        %v1229 = vunpack.c.l.b16 %v1090
        %v1230 = vpack.c.b16 %v1229, %v1228
        %v1233 = vsel %vm1187, %v933, 0
        %1235 = vmatpush.bf16.msra.mxu0 0
        %1236 = vmatpush.bf16.msra.mxu0 0
        %1237 = vmatpush.bf16.msra.mxu0 0
        %1238 = vmatpush.bf16.msra.mxu0 0
        %1239 = vmatpush.bf16.msra.mxu0 0
        %1240 = vmatpush.bf16.msra.mxu0 0
        %1241 = vmatpush.bf16.msra.mxu0 0
        %1242 = vmatpush.bf16.msra.mxu0 %v1230
        %1243 = vmatmul.bf16.gmra.mxu0 %v1233
        %v1244 = vpop.f32.mrf.mxu0
        %v1245 = vadd.f32 %v611, %v1244
        %v1246 = vpop.f32.mrf.mxu0
        %1247 = vdwg.mxu0
        %v1250 = vunpack.c.l.b16 %v1091
        %v1251 = vunpack.c.l.b16 %v1092
        %v1252 = vpack.c.b16 %v1251, %v1250
        %v1255 = vsel %vm1187, %v949, 0
        %1257 = vmatpush.bf16.msra.mxu0 0
        %1258 = vmatpush.bf16.msra.mxu0 0
        %1259 = vmatpush.bf16.msra.mxu0 0
        %1260 = vmatpush.bf16.msra.mxu0 0
        %1261 = vmatpush.bf16.msra.mxu0 0
        %1262 = vmatpush.bf16.msra.mxu0 0
        %1263 = vmatpush.bf16.msra.mxu0 0
        %1264 = vmatpush.bf16.msra.mxu0 %v1252
        %1265 = vmatmul.bf16.gmra.mxu0 %v1255
        %v1266 = vpop.f32.mrf.mxu0
        %v1267 = vadd.f32 %v611, %v1266
        %v1268 = vpop.f32.mrf.mxu0
        %1269 = vdwg.mxu0
        %v1272 = vunpack.c.l.b16 %v1093
        %v1273 = vunpack.c.l.b16 %v1094
        %v1274 = vpack.c.b16 %v1273, %v1272
        %v1277 = vsel %vm1187, %v965, 0
        %1279 = vmatpush.bf16.msra.mxu0 0
        %1280 = vmatpush.bf16.msra.mxu0 0
        %1281 = vmatpush.bf16.msra.mxu0 0
        %1282 = vmatpush.bf16.msra.mxu0 0
        %1283 = vmatpush.bf16.msra.mxu0 0
        %1284 = vmatpush.bf16.msra.mxu0 0
        %1285 = vmatpush.bf16.msra.mxu0 0
        %1286 = vmatpush.bf16.msra.mxu0 %v1274
        %1287 = vmatmul.bf16.gmra.mxu0 %v1277
        %v1288 = vpop.f32.mrf.mxu0
        %v1289 = vadd.f32 %v611, %v1288
        %v1290 = vpop.f32.mrf.mxu0
        %1291 = vdwg.mxu0
        %v1294 = vunpack.c.l.b16 %v1095
        %v1295 = vunpack.c.l.b16 %v1096
        %v1296 = vpack.c.b16 %v1295, %v1294
        %v1299 = vsel %vm1187, %v981, 0
        %1301 = vmatpush.bf16.msra.mxu0 0
        %1302 = vmatpush.bf16.msra.mxu0 0
        %1303 = vmatpush.bf16.msra.mxu0 0
        %1304 = vmatpush.bf16.msra.mxu0 0
        %1305 = vmatpush.bf16.msra.mxu0 0
        %1306 = vmatpush.bf16.msra.mxu0 0
        %1307 = vmatpush.bf16.msra.mxu0 0
        %1308 = vmatpush.bf16.msra.mxu0 %v1296
        %1309 = vmatmul.bf16.gmra.mxu0 %v1299
        %v1310 = vpop.f32.mrf.mxu0
        %v1311 = vadd.f32 %v611, %v1310
        %v1312 = vpop.f32.mrf.mxu0
        %1313 = vdwg.mxu0
        %v1316 = vunpack.c.l.b16 %v1097
        %v1317 = vunpack.c.l.b16 %v1098
        %v1318 = vpack.c.b16 %v1317, %v1316
        %v1321 = vsel %vm1187, %v997, 0
        %1323 = vmatpush.bf16.msra.mxu0 0
        %1324 = vmatpush.bf16.msra.mxu0 0
        %1325 = vmatpush.bf16.msra.mxu0 0
        %1326 = vmatpush.bf16.msra.mxu0 0
        %1327 = vmatpush.bf16.msra.mxu0 0
        %1328 = vmatpush.bf16.msra.mxu0 0
        %1329 = vmatpush.bf16.msra.mxu0 0
        %1330 = vmatpush.bf16.msra.mxu0 %v1318
        %1331 = vmatmul.bf16.gmra.mxu0 %v1321
        %v1332 = vpop.f32.mrf.mxu0
        %v1333 = vadd.f32 %v611, %v1332
        %v1334 = vpop.f32.mrf.mxu0
        %1335 = vdwg.mxu0
        %v1338 = vunpack.c.l.b16 %v1099
        %v1339 = vunpack.c.l.b16 %v1100
        %v1340 = vpack.c.b16 %v1339, %v1338
        %v1343 = vsel %vm1187, %v1013, 0
        %1345 = vmatpush.bf16.msra.mxu0 0
        %1346 = vmatpush.bf16.msra.mxu0 0
        %1347 = vmatpush.bf16.msra.mxu0 0
        %1348 = vmatpush.bf16.msra.mxu0 0
        %1349 = vmatpush.bf16.msra.mxu0 0
        %1350 = vmatpush.bf16.msra.mxu0 0
        %1351 = vmatpush.bf16.msra.mxu0 0
        %1352 = vmatpush.bf16.msra.mxu0 %v1340
        %1353 = vmatmul.bf16.gmra.mxu0 %v1343
        %v1354 = vpop.f32.mrf.mxu0
        %v1355 = vadd.f32 %v611, %v1354
        %v1356 = vpop.f32.mrf.mxu0
        %1357 = vdwg.mxu0
        %vm1358 = vcmask 64512
        %v1359 = vsel %vm1358, %v1201, -inf
        %1360 = vmax.xlane.f32.xlu0 %v1359
        %v1361 = vpop.xlane.xlu0 %1360
        %v1362 = vsel %vm1358, %v1223, -inf
        %1363 = vmax.xlane.f32.xlu0 %v1362
        %v1364 = vpop.xlane.xlu0 %1363
        %v1365 = vsel %vm1358, %v1245, -inf
        %1366 = vmax.xlane.f32.xlu0 %v1365
        %v1367 = vpop.xlane.xlu0 %1366
        %v1368 = vsel %vm1358, %v1267, -inf
        %1369 = vmax.xlane.f32.xlu0 %v1368
        %v1370 = vpop.xlane.xlu0 %1369
        %v1371 = vsel %vm1358, %v1289, -inf
        %1372 = vmax.xlane.f32.xlu0 %v1371
        %v1373 = vpop.xlane.xlu0 %1372
        %v1374 = vsel %vm1358, %v1311, -inf
        %1375 = vmax.xlane.f32.xlu0 %v1374
        %v1376 = vpop.xlane.xlu0 %1375
        %v1377 = vsel %vm1358, %v1333, -inf
        %1378 = vmax.xlane.f32.xlu0 %v1377
        %v1379 = vpop.xlane.xlu0 %1378
        %v1380 = vsel %vm1358, %v1355, -inf
        %1381 = vmax.xlane.f32.xlu0 %v1380
        %v1382 = vpop.xlane.xlu0 %1381
        %v1383 = vsub.f32 %v1201, %v1361
        %v1384 = vsub.f32 %v1223, %v1364
        %v1385 = vsub.f32 %v1245, %v1367
        %v1386 = vsub.f32 %v1267, %v1370
        %v1387 = vsub.f32 %v1289, %v1373
        %v1388 = vsub.f32 %v1311, %v1376
        %v1389 = vsub.f32 %v1333, %v1379
        %v1390 = vsub.f32 %v1355, %v1382
        %v1391 = vmul.f32 %v1383, 1.442695
        %v1392 = vpow.pop %v1391
        %v1393 = vmul.f32 %v1384, 1.442695
        %v1394 = vpow.pop %v1393
        %v1395 = vmul.f32 %v1385, 1.442695
        %v1396 = vpow.pop %v1395
        %v1397 = vmul.f32 %v1386, 1.442695
        %v1398 = vpow.pop %v1397
        %v1399 = vmul.f32 %v1387, 1.442695
        %v1400 = vpow.pop %v1399
        %v1401 = vmul.f32 %v1388, 1.442695
        %v1402 = vpow.pop %v1401
        %v1403 = vmul.f32 %v1389, 1.442695
        %v1404 = vpow.pop %v1403
        %v1405 = vmul.f32 %v1390, 1.442695
        %v1406 = vpow.pop %v1405
        %v1407 = vsel %vm1358, %v1392, 0.0
        %1408 = vadd.xlane.f32.xlu0 %v1407
        %v1409 = vpop.xlane.xlu0 %1408
        %v1410 = vsel %vm1358, %v1394, 0.0
        %1411 = vadd.xlane.f32.xlu0 %v1410
        %v1412 = vpop.xlane.xlu0 %1411
        %v1413 = vsel %vm1358, %v1396, 0.0
        %1414 = vadd.xlane.f32.xlu0 %v1413
        %v1415 = vpop.xlane.xlu0 %1414
        %v1416 = vsel %vm1358, %v1398, 0.0
        %1417 = vadd.xlane.f32.xlu0 %v1416
        %v1418 = vpop.xlane.xlu0 %1417
        %v1419 = vsel %vm1358, %v1400, 0.0
        %1420 = vadd.xlane.f32.xlu0 %v1419
        %v1421 = vpop.xlane.xlu0 %1420
        %v1422 = vsel %vm1358, %v1402, 0.0
        %1423 = vadd.xlane.f32.xlu0 %v1422
        %v1424 = vpop.xlane.xlu0 %1423
        %v1425 = vsel %vm1358, %v1404, 0.0
        %1426 = vadd.xlane.f32.xlu0 %v1425
        %v1427 = vpop.xlane.xlu0 %1426
        %v1428 = vsel %vm1358, %v1406, 0.0
        %1429 = vadd.xlane.f32.xlu0 %v1428
        %v1430 = vpop.xlane.xlu0 %1429
        %v1431 = vrcp.pop %v1409
        %v1432 = vrcp.pop %v1412
        %v1433 = vrcp.pop %v1415
        %v1434 = vrcp.pop %v1418
        %v1435 = vrcp.pop %v1421
        %v1436 = vrcp.pop %v1424
        %v1437 = vrcp.pop %v1427
        %v1438 = vrcp.pop %v1430
        %v1439 = vmul.f32 %v1392, %v1431
        %v1440 = vmul.f32 %v1394, %v1432
        %v1441 = vmul.f32 %v1396, %v1433
        %v1442 = vmul.f32 %v1398, %v1434
        %v1443 = vmul.f32 %v1400, %v1435
        %v1444 = vmul.f32 %v1402, %v1436
        %v1445 = vmul.f32 %v1404, %v1437
        %v1446 = vmul.f32 %v1406, %v1438
        %v1447 = vpack.c.bf16 %v1439, %v1439
        %v1448 = vpack.c.bf16 %v1440, %v1440
        %v1449 = vpack.c.bf16 %v1441, %v1441
        %v1450 = vpack.c.bf16 %v1442, %v1442
        %v1451 = vpack.c.bf16 %v1443, %v1443
        %v1452 = vpack.c.bf16 %v1444, %v1444
        %v1453 = vpack.c.bf16 %v1445, %v1445
        %v1454 = vpack.c.bf16 %v1446, %v1446
        %v1457 = vunpack.c.l.b16 %v1165
        %v1458 = vunpack.c.l.b16 %v1166
        %v1459 = vpack.c.b16 %v1458, %v1457
        %v1461 = vsel %vm1358, %v1459, 0
        %v1464 = vsel %vm1358, %v1447, 0
        %1466 = vmatpush.bf16.xpose.msra.mxu0 0
        %1467 = vmatpush.bf16.xpose.msra.mxu0 0
        %1468 = vmatpush.bf16.xpose.msra.mxu0 0
        %1469 = vmatpush.bf16.xpose.msra.mxu0 0
        %1470 = vmatpush.bf16.xpose.msra.mxu0 0
        %1471 = vmatpush.bf16.xpose.msra.mxu0 0
        %1472 = vmatpush.bf16.xpose.msra.mxu0 0
        %1473 = vmatpush.bf16.xpose.msra.mxu0 %v1464
        %1474 = vmatmul.bf16.gmra.mxu0 %v1461
        %v1475 = vpop.f32.mrf.mxu0
        %v1476 = vadd.f32 0.0, %v1475
        %v1477 = vpop.f32.mrf.mxu0
        %v1478 = vadd.f32 0.0, %v1477
        %1479 = vdwg.mxu0
        %v1482 = vunpack.c.l.b16 %v1167
        %v1483 = vunpack.c.l.b16 %v1168
        %v1484 = vpack.c.b16 %v1483, %v1482
        %v1486 = vsel %vm1358, %v1484, 0
        %v1489 = vsel %vm1358, %v1448, 0
        %1491 = vmatpush.bf16.xpose.msra.mxu0 0
        %1492 = vmatpush.bf16.xpose.msra.mxu0 0
        %1493 = vmatpush.bf16.xpose.msra.mxu0 0
        %1494 = vmatpush.bf16.xpose.msra.mxu0 0
        %1495 = vmatpush.bf16.xpose.msra.mxu0 0
        %1496 = vmatpush.bf16.xpose.msra.mxu0 0
        %1497 = vmatpush.bf16.xpose.msra.mxu0 0
        %1498 = vmatpush.bf16.xpose.msra.mxu0 %v1489
        %1499 = vmatmul.bf16.gmra.mxu0 %v1486
        %v1500 = vpop.f32.mrf.mxu0
        %v1501 = vadd.f32 0.0, %v1500
        %v1502 = vpop.f32.mrf.mxu0
        %v1503 = vadd.f32 0.0, %v1502
        %1504 = vdwg.mxu0
        %v1507 = vunpack.c.l.b16 %v1169
        %v1508 = vunpack.c.l.b16 %v1170
        %v1509 = vpack.c.b16 %v1508, %v1507
        %v1511 = vsel %vm1358, %v1509, 0
        %v1514 = vsel %vm1358, %v1449, 0
        %1516 = vmatpush.bf16.xpose.msra.mxu0 0
        %1517 = vmatpush.bf16.xpose.msra.mxu0 0
        %1518 = vmatpush.bf16.xpose.msra.mxu0 0
        %1519 = vmatpush.bf16.xpose.msra.mxu0 0
        %1520 = vmatpush.bf16.xpose.msra.mxu0 0
        %1521 = vmatpush.bf16.xpose.msra.mxu0 0
        %1522 = vmatpush.bf16.xpose.msra.mxu0 0
        %1523 = vmatpush.bf16.xpose.msra.mxu0 %v1514
        %1524 = vmatmul.bf16.gmra.mxu0 %v1511
        %v1525 = vpop.f32.mrf.mxu0
        %v1526 = vadd.f32 0.0, %v1525
        %v1527 = vpop.f32.mrf.mxu0
        %v1528 = vadd.f32 0.0, %v1527
        %1529 = vdwg.mxu0
        %v1532 = vunpack.c.l.b16 %v1171
        %v1533 = vunpack.c.l.b16 %v1172
        %v1534 = vpack.c.b16 %v1533, %v1532
        %v1536 = vsel %vm1358, %v1534, 0
        %v1539 = vsel %vm1358, %v1450, 0
        %1541 = vmatpush.bf16.xpose.msra.mxu0 0
        %1542 = vmatpush.bf16.xpose.msra.mxu0 0
        %1543 = vmatpush.bf16.xpose.msra.mxu0 0
        %1544 = vmatpush.bf16.xpose.msra.mxu0 0
        %1545 = vmatpush.bf16.xpose.msra.mxu0 0
        %1546 = vmatpush.bf16.xpose.msra.mxu0 0
        %1547 = vmatpush.bf16.xpose.msra.mxu0 0
        %1548 = vmatpush.bf16.xpose.msra.mxu0 %v1539
        %1549 = vmatmul.bf16.gmra.mxu0 %v1536
        %v1550 = vpop.f32.mrf.mxu0
        %v1551 = vadd.f32 0.0, %v1550
        %v1552 = vpop.f32.mrf.mxu0
        %v1553 = vadd.f32 0.0, %v1552
        %1554 = vdwg.mxu0
        %v1557 = vunpack.c.l.b16 %v1173
        %v1558 = vunpack.c.l.b16 %v1174
        %v1559 = vpack.c.b16 %v1558, %v1557
        %v1561 = vsel %vm1358, %v1559, 0
        %v1564 = vsel %vm1358, %v1451, 0
        %1566 = vmatpush.bf16.xpose.msra.mxu0 0
        %1567 = vmatpush.bf16.xpose.msra.mxu0 0
        %1568 = vmatpush.bf16.xpose.msra.mxu0 0
        %1569 = vmatpush.bf16.xpose.msra.mxu0 0
        %1570 = vmatpush.bf16.xpose.msra.mxu0 0
        %1571 = vmatpush.bf16.xpose.msra.mxu0 0
        %1572 = vmatpush.bf16.xpose.msra.mxu0 0
        %1573 = vmatpush.bf16.xpose.msra.mxu0 %v1564
        %1574 = vmatmul.bf16.gmra.mxu0 %v1561
        %v1575 = vpop.f32.mrf.mxu0
        %v1576 = vadd.f32 0.0, %v1575
        %v1577 = vpop.f32.mrf.mxu0
        %v1578 = vadd.f32 0.0, %v1577
        %1579 = vdwg.mxu0
        %v1582 = vunpack.c.l.b16 %v1175
        %v1583 = vunpack.c.l.b16 %v1176
        %v1584 = vpack.c.b16 %v1583, %v1582
        %v1586 = vsel %vm1358, %v1584, 0
        %v1589 = vsel %vm1358, %v1452, 0
        %1591 = vmatpush.bf16.xpose.msra.mxu0 0
        %1592 = vmatpush.bf16.xpose.msra.mxu0 0
        %1593 = vmatpush.bf16.xpose.msra.mxu0 0
        %1594 = vmatpush.bf16.xpose.msra.mxu0 0
        %1595 = vmatpush.bf16.xpose.msra.mxu0 0
        %1596 = vmatpush.bf16.xpose.msra.mxu0 0
        %1597 = vmatpush.bf16.xpose.msra.mxu0 0
        %1598 = vmatpush.bf16.xpose.msra.mxu0 %v1589
        %1599 = vmatmul.bf16.gmra.mxu0 %v1586
        %v1600 = vpop.f32.mrf.mxu0
        %v1601 = vadd.f32 0.0, %v1600
        %v1602 = vpop.f32.mrf.mxu0
        %v1603 = vadd.f32 0.0, %v1602
        %1604 = vdwg.mxu0
        %v1607 = vunpack.c.l.b16 %v1177
        %v1608 = vunpack.c.l.b16 %v1178
        %v1609 = vpack.c.b16 %v1608, %v1607
        %v1611 = vsel %vm1358, %v1609, 0
        %v1614 = vsel %vm1358, %v1453, 0
        %1616 = vmatpush.bf16.xpose.msra.mxu0 0
        %1617 = vmatpush.bf16.xpose.msra.mxu0 0
        %1618 = vmatpush.bf16.xpose.msra.mxu0 0
        %1619 = vmatpush.bf16.xpose.msra.mxu0 0
        %1620 = vmatpush.bf16.xpose.msra.mxu0 0
        %1621 = vmatpush.bf16.xpose.msra.mxu0 0
        %1622 = vmatpush.bf16.xpose.msra.mxu0 0
        %1623 = vmatpush.bf16.xpose.msra.mxu0 %v1614
        %1624 = vmatmul.bf16.gmra.mxu0 %v1611
        %v1625 = vpop.f32.mrf.mxu0
        %v1626 = vadd.f32 0.0, %v1625
        %v1627 = vpop.f32.mrf.mxu0
        %v1628 = vadd.f32 0.0, %v1627
        %1629 = vdwg.mxu0
        %v1632 = vunpack.c.l.b16 %v1179
        %v1633 = vunpack.c.l.b16 %v1180
        %v1634 = vpack.c.b16 %v1633, %v1632
        %v1636 = vsel %vm1358, %v1634, 0
        %v1639 = vsel %vm1358, %v1454, 0
        %1641 = vmatpush.bf16.xpose.msra.mxu0 0
        %1642 = vmatpush.bf16.xpose.msra.mxu0 0
        %1643 = vmatpush.bf16.xpose.msra.mxu0 0
        %1644 = vmatpush.bf16.xpose.msra.mxu0 0
        %1645 = vmatpush.bf16.xpose.msra.mxu0 0
        %1646 = vmatpush.bf16.xpose.msra.mxu0 0
        %1647 = vmatpush.bf16.xpose.msra.mxu0 0
        %1648 = vmatpush.bf16.xpose.msra.mxu0 %v1639
        %1649 = vmatmul.bf16.gmra.mxu0 %v1636
        %v1650 = vpop.f32.mrf.mxu0
        %v1651 = vadd.f32 0.0, %v1650
        %v1652 = vpop.f32.mrf.mxu0
        %v1653 = vadd.f32 0.0, %v1652
        %1654 = vdwg.mxu0
        %1655 = vxpose.xlu0.b32.start [1/16] %v1476, 128
        %1656 = vxpose.xlu0.b32.cont [2/16] %v1478, 128
        %1657 = vxpose.xlu0.b32.cont [3/16] %v1501, 128
        %1658 = vxpose.xlu0.b32.cont [4/16] %v1503, 128
        %1659 = vxpose.xlu0.b32.cont [5/16] %v1526, 128
        %1660 = vxpose.xlu0.b32.cont [6/16] %v1528, 128
        %1661 = vxpose.xlu0.b32.cont [7/16] %v1551, 128
        %1662 = vxpose.xlu0.b32.cont [8/16] %v1553, 128
        %1663 = vxpose.xlu0.b32.cont [9/16] 0.0, 128
        %1664 = vxpose.xlu0.b32.cont [10/16] 0.0, 128
        %1665 = vxpose.xlu0.b32.cont [11/16] 0.0, 128
        %1666 = vxpose.xlu0.b32.cont [12/16] 0.0, 128
        %1667 = vxpose.xlu0.b32.cont [13/16] 0.0, 128
        %1668 = vxpose.xlu0.b32.cont [14/16] 0.0, 128
        %1669 = vxpose.xlu0.b32.cont [15/16] 0.0, 128
        %1670 = vxpose.xlu0.b32.end [16/16] 0.0, 128
        %v1671 = vpop.trf.xlu0
        %v1672 = vpop.trf.xlu0
        %v1673 = vpop.trf.xlu0
        %v1674 = vpop.trf.xlu0
        %v1675 = vpop.trf.xlu0
        %v1676 = vpop.trf.xlu0
        %v1677 = vpop.trf.xlu0
        %v1678 = vpop.trf.xlu0
        %v1679 = vpop.trf.xlu0
        %v1680 = vpop.trf.xlu0
        %v1681 = vpop.trf.xlu0
        %v1682 = vpop.trf.xlu0
        %v1683 = vpop.trf.xlu0
        %v1684 = vpop.trf.xlu0
        %v1685 = vpop.trf.xlu0
        %v1686 = vpop.trf.xlu0
        %1687 = vxpose.xlu0.b32.start [1/16] %v1576, 128
        %1688 = vxpose.xlu0.b32.cont [2/16] %v1578, 128
        %1689 = vxpose.xlu0.b32.cont [3/16] %v1601, 128
        %1690 = vxpose.xlu0.b32.cont [4/16] %v1603, 128
        %1691 = vxpose.xlu0.b32.cont [5/16] %v1626, 128
        %1692 = vxpose.xlu0.b32.cont [6/16] %v1628, 128
        %1693 = vxpose.xlu0.b32.cont [7/16] %v1651, 128
        %1694 = vxpose.xlu0.b32.cont [8/16] %v1653, 128
        %1695 = vxpose.xlu0.b32.cont [9/16] 0.0, 128
        %1696 = vxpose.xlu0.b32.cont [10/16] 0.0, 128
        %1697 = vxpose.xlu0.b32.cont [11/16] 0.0, 128
        %1698 = vxpose.xlu0.b32.cont [12/16] 0.0, 128
        %1699 = vxpose.xlu0.b32.cont [13/16] 0.0, 128
        %1700 = vxpose.xlu0.b32.cont [14/16] 0.0, 128
        %1701 = vxpose.xlu0.b32.cont [15/16] 0.0, 128
        %1702 = vxpose.xlu0.b32.end [16/16] 0.0, 128
        %v1703 = vpop.trf.xlu0
        %v1704 = vpop.trf.xlu0
        %v1705 = vpop.trf.xlu0
        %v1706 = vpop.trf.xlu0
        %v1707 = vpop.trf.xlu0
        %v1708 = vpop.trf.xlu0
        %v1709 = vpop.trf.xlu0
        %v1710 = vpop.trf.xlu0
        %v1711 = vpop.trf.xlu0
        %v1712 = vpop.trf.xlu0
        %v1713 = vpop.trf.xlu0
        %v1714 = vpop.trf.xlu0
        %v1715 = vpop.trf.xlu0
        %v1716 = vpop.trf.xlu0
        %v1717 = vpop.trf.xlu0
        %v1718 = vpop.trf.xlu0
        %v1719 = vpack.c.bf16 %v1671, %v1671
        %v1720 = vpack.c.bf16 %v1703, %v1703
        %v1721 = vld [vmem:[%s473] sm:$0xf]
        %v1722 = vld [vmem:[%s473 + $0x4] sm:$0xf]
        %v1723 = vld [vmem:[%s473 + $0x8] sm:$0xf]
        %v1724 = vld [vmem:[%s473 + $0xc] sm:$0xf]
        %v1725 = vld [vmem:[%s473 + $0x10] sm:$0xf]
        %v1726 = vld [vmem:[%s473 + $0x14] sm:$0xf]
        %v1727 = vld [vmem:[%s473 + $0x18] sm:$0xf]
        %v1728 = vld [vmem:[%s473 + $0x1c] sm:$0xf]
        %v1729 = vperm.slane %v603, 5
        %v1732 = vunpack.c.l.b16 %v1719
        %v1733 = vunpack.c.l.b16 %v1720
        %v1734 = vpack.c.b16 %v1733, %v1732
        %v1743 = vunpack.c.l.b16 %v1721
        %v1744 = vunpack.c.l.b16 %v1722
        %v1745 = vunpack.c.l.b16 %v1723
        %v1746 = vunpack.c.l.b16 %v1724
        %v1747 = vunpack.c.l.b16 %v1725
        %v1748 = vunpack.c.l.b16 %v1726
        %v1749 = vunpack.c.l.b16 %v1727
        %v1750 = vunpack.c.l.b16 %v1728
        %v1751 = vpack.c.b16 %v1744, %v1743
        %v1752 = vpack.c.b16 %v1746, %v1745
        %v1753 = vpack.c.b16 %v1748, %v1747
        %v1754 = vpack.c.b16 %v1750, %v1749
        %v1760 = vsel %vm612, %v1734, 0
        %1762 = vmatpush.bf16.msra.mxu0 0
        %1763 = vmatpush.bf16.msra.mxu0 0
        %1764 = vmatpush.bf16.msra.mxu0 0
        %1765 = vmatpush.bf16.msra.mxu0 0
        %1766 = vmatpush.bf16.msra.mxu0 %v1754
        %1767 = vmatpush.bf16.msra.mxu0 %v1753
        %1768 = vmatpush.bf16.msra.mxu0 %v1752
        %1769 = vmatpush.bf16.msra.mxu0 %v1751
        %1770 = vmatmul.bf16.gmra.mxu0 %v1760
        %v1771 = vpop.f32.mrf.mxu0
        %v1772 = vadd.f32 %v1729, %v1771
        %v1773 = vpop.f32.mrf.mxu0
        %v1774 = vadd.f32 %v1729, %v1773
        %1775 = vdwg.mxu0
        %v1776 = vadd.f32 %v601, %v1772
        %v1777 = vadd.f32 %v602, %v1774
        %v1778 = vsel %vm612, %v1776, 0.0
        %1779 = vadd.xlane.f32.xlu0 %v1778
        %v1780 = vpop.xlane.xlu0 %1779
        %v1781 = vsel %vm612, %v1777, 0.0
        %1782 = vadd.xlane.f32.xlu0 %v1781
        %v1783 = vpop.xlane.xlu0 %1782
        %v1784 = vmul.f32 %v1780, %v625
        %v1785 = vmul.f32 %v1783, %v625
        %v1786 = vsub.f32 %v1776, %v1784
        %v1787 = vsub.f32 %v1777, %v1785
        %v1788 = vmul.f32 %v1786, %v1786
        %v1789 = vmul.f32 %v1787, %v1787
        %v1790 = vsel %vm612, %v1788, 0.0
        %1791 = vadd.xlane.f32.xlu0 %v1790
        %v1792 = vpop.xlane.xlu0 %1791
        %v1793 = vsel %vm612, %v1789, 0.0
        %1794 = vadd.xlane.f32.xlu0 %v1793
        %v1795 = vpop.xlane.xlu0 %1794
        %v1796 = vmul.f32 %v1792, %v625
        %v1797 = vmul.f32 %v1795, %v625
        %v1798 = vadd.f32 %v1796, 1e-05
        %v1799 = vadd.f32 %v1797, 1e-05
        %v1800 = vrsqrt.pop %v1798
        %v1801 = vmul.f32 %v1800, %v1798
        %v1802 = vmul.f32 %v1801, %v1800
        %v1803 = vmul.f32 0.5, %v1802
        %v1804 = vsub.f32 1.5, %v1803
        %v1805 = vmul.f32 %v1800, %v1804
        %vm1806 = vweird.f32 %v1798
        %vm1807 = vweird.f32 %v1800
        %vm1808 = vmor %vm1806, %vm1807
        %v1809 = vsel %vm1808, %v1800, %v1805
        %v1810 = vrsqrt.pop %v1799
        %v1811 = vmul.f32 %v1810, %v1799
        %v1812 = vmul.f32 %v1811, %v1810
        %v1813 = vmul.f32 0.5, %v1812
        %v1814 = vsub.f32 1.5, %v1813
        %v1815 = vmul.f32 %v1810, %v1814
        %vm1816 = vweird.f32 %v1799
        %vm1817 = vweird.f32 %v1810
        %vm1818 = vmor %vm1816, %vm1817
        %v1819 = vsel %vm1818, %v1810, %v1815
        %v1820 = vmul.f32 %v1786, %v1809
        %v1821 = vmul.f32 %v1787, %v1819
        %v1822 = vperm.slane %v603, 6
        %v1823 = vmul.f32 %v1820, %v1822
        %v1824 = vmul.f32 %v1821, %v1822
        %v1825 = vperm.slane %v603, 7
        %v1826 = vadd.f32 %v1823, %v1825
        %v1827 = vadd.f32 %v1824, %v1825
        %v1828 = vpack.c.bf16 %v1826, %v1826
        %v1829 = vpack.c.bf16 %v1827, %v1827
        %v1830 = vld [vmem:[%s483] sm:$0xf]
        %v1831 = vld [vmem:[%s483 + $0x4] sm:$0xf]
        %v1832 = vld [vmem:[%s483 + $0x8] sm:$0xf]
        %v1833 = vld [vmem:[%s483 + $0xc] sm:$0xf]
        %v1834 = vld [vmem:[%s483 + $0x10] sm:$0xf]
        %v1835 = vld [vmem:[%s483 + $0x14] sm:$0xf]
        %v1836 = vld [vmem:[%s483 + $0x18] sm:$0xf]
        %v1837 = vld [vmem:[%s483 + $0x1c] sm:$0xf]
        %v1839 = vperm.slane %v605, 0
        %v1843 = vunpack.c.l.b16 %v1828
        %v1844 = vunpack.c.l.b16 %v1829
        %v1845 = vpack.c.b16 %v1844, %v1843
        %v1854 = vunpack.c.l.b16 %v1830
        %v1855 = vunpack.c.l.b16 %v1831
        %v1856 = vunpack.c.l.b16 %v1832
        %v1857 = vunpack.c.l.b16 %v1833
        %v1858 = vunpack.c.l.b16 %v1834
        %v1859 = vunpack.c.l.b16 %v1835
        %v1860 = vunpack.c.l.b16 %v1836
        %v1861 = vunpack.c.l.b16 %v1837
        %v1862 = vpack.c.b16 %v1855, %v1854
        %v1863 = vpack.c.b16 %v1857, %v1856
        %v1864 = vpack.c.b16 %v1859, %v1858
        %v1865 = vpack.c.b16 %v1861, %v1860
        %v1871 = vsel %vm612, %v1845, 0
        %1873 = vmatpush.bf16.msra.mxu0 0
        %1874 = vmatpush.bf16.msra.mxu0 0
        %1875 = vmatpush.bf16.msra.mxu0 0
        %1876 = vmatpush.bf16.msra.mxu0 0
        %1877 = vmatpush.bf16.msra.mxu0 %v1865
        %1878 = vmatpush.bf16.msra.mxu0 %v1864
        %1879 = vmatpush.bf16.msra.mxu0 %v1863
        %1880 = vmatpush.bf16.msra.mxu0 %v1862
        %1881 = vmatmul.bf16.gmra.mxu0 %v1871
        %v1882 = vpop.f32.mrf.mxu0
        %v1883 = vadd.f32 %v1839, %v1882
        %v1884 = vpop.f32.mrf.mxu0
        %v1885 = vadd.f32 %v1839, %v1884
        %1886 = vdwg.mxu0
        %v1887 = vmul.f32 %v1883, 1.702
        %v1888 = vmul.f32 %v1885, 1.702
        %v1889 = vxor.u32 %v1887, 2147483648
        %v1890 = vxor.u32 %v1888, 2147483648
        %v1891 = vmul.f32 %v1889, 1.442695
        %v1892 = vpow.pop %v1891
        %v1893 = vmul.f32 %v1890, 1.442695
        %v1894 = vpow.pop %v1893
        %v1895 = vadd.f32 %v1892, 1.0
        %v1896 = vadd.f32 %v1894, 1.0
        %v1897 = vrcp.pop %v1895
        %v1898 = vmul.f32 %v1895, %v1897
        %v1899 = vsub.f32 1.0, %v1898
        %v1900 = vmul.f32 %v1897, %v1899
        %v1901 = vadd.f32 %v1897, %v1900
        %vm1902 = vweird.f32 %v1895
        %vm1903 = vweird.f32 %v1897
        %vm1904 = vmor %vm1902, %vm1903
        %v1905 = vsel %vm1904, %v1897, %v1901
        %v1906 = vand.u32 2147483647, %v1895
        %vm1907 = vcmp.eq.f32.partialorder %v1906, 8.507059e+37
        %v1908 = vand.u32 %v1895, 2147483648
        %v1909 = vor.u32 1.1754944e-38, %v1908
        %v1910 = vsel %vm1907, %v1909, %v1905
        %v1911 = vmul.f32 1.0, %v1910
        %v1912 = vrcp.pop %v1896
        %v1913 = vmul.f32 %v1896, %v1912
        %v1914 = vsub.f32 1.0, %v1913
        %v1915 = vmul.f32 %v1912, %v1914
        %v1916 = vadd.f32 %v1912, %v1915
        %vm1917 = vweird.f32 %v1896
        %vm1918 = vweird.f32 %v1912
        %vm1919 = vmor %vm1917, %vm1918
        %v1920 = vsel %vm1919, %v1912, %v1916
        %v1921 = vand.u32 2147483647, %v1896
        %vm1922 = vcmp.eq.f32.partialorder %v1921, 8.507059e+37
        %v1923 = vand.u32 %v1896, 2147483648
        %v1924 = vor.u32 1.1754944e-38, %v1923
        %v1925 = vsel %vm1922, %v1924, %v1920
        %v1926 = vmul.f32 1.0, %v1925
        %v1927 = vmul.f32 %v1883, %v1911
        %v1928 = vmul.f32 %v1885, %v1926
        %v1929 = vpack.c.bf16 %v1927, %v1927
        %v1930 = vpack.c.bf16 %v1928, %v1928
        %v1931 = vld [vmem:[%s589] sm:$0xf]
        %v1932 = vld [vmem:[%s589 + $0x4] sm:$0xf]
        %v1933 = vld [vmem:[%s589 + $0x8] sm:$0xf]
        %v1934 = vld [vmem:[%s589 + $0xc] sm:$0xf]
        %v1935 = vld [vmem:[%s589 + $0x10] sm:$0xf]
        %v1936 = vld [vmem:[%s589 + $0x14] sm:$0xf]
        %v1937 = vld [vmem:[%s589 + $0x18] sm:$0xf]
        %v1938 = vld [vmem:[%s589 + $0x1c] sm:$0xf]
        %v1939 = vld [vmem:[%s589 + $0x20] sm:$0xf]
        %v1940 = vld [vmem:[%s589 + $0x24] sm:$0xf]
        %v1941 = vld [vmem:[%s589 + $0x28] sm:$0xf]
        %v1942 = vld [vmem:[%s589 + $0x2c] sm:$0xf]
        %v1943 = vld [vmem:[%s589 + $0x30] sm:$0xf]
        %v1944 = vld [vmem:[%s589 + $0x34] sm:$0xf]
        %v1945 = vld [vmem:[%s589 + $0x38] sm:$0xf]
        %v1946 = vld [vmem:[%s589 + $0x3c] sm:$0xf]
        %v1947 = vperm.slane %v604, 0
        %v1950 = vunpack.c.l.b16 %v1929
        %v1951 = vunpack.c.l.b16 %v1930
        %v1952 = vpack.c.b16 %v1951, %v1950
        %v1970 = vunpack.c.l.b16 %v1931
        %v1971 = vunpack.c.l.b16 %v1932
        %v1972 = vunpack.c.l.b16 %v1933
        %v1973 = vunpack.c.l.b16 %v1934
        %v1974 = vunpack.c.l.b16 %v1935
        %v1975 = vunpack.c.l.b16 %v1936
        %v1976 = vunpack.c.l.b16 %v1937
        %v1977 = vunpack.c.l.b16 %v1938
        %v1978 = vunpack.c.l.b16 %v1939
        %v1979 = vunpack.c.l.b16 %v1940
        %v1980 = vunpack.c.l.b16 %v1941
        %v1981 = vunpack.c.l.b16 %v1942
        %v1982 = vunpack.c.l.b16 %v1943
        %v1983 = vunpack.c.l.b16 %v1944
        %v1984 = vunpack.c.l.b16 %v1945
        %v1985 = vunpack.c.l.b16 %v1946
        %v1986 = vpack.c.b16 %v1971, %v1970
        %v1987 = vpack.c.b16 %v1973, %v1972
        %v1988 = vpack.c.b16 %v1975, %v1974
        %v1989 = vpack.c.b16 %v1977, %v1976
        %v1990 = vpack.c.b16 %v1979, %v1978
        %v1991 = vpack.c.b16 %v1981, %v1980
        %v1992 = vpack.c.b16 %v1983, %v1982
        %v1993 = vpack.c.b16 %v1985, %v1984
        %2002 = vmatpush.bf16.msra.mxu0 %v1993
        %2003 = vmatpush.bf16.msra.mxu0 %v1992
        %2004 = vmatpush.bf16.msra.mxu0 %v1991
        %2005 = vmatpush.bf16.msra.mxu0 %v1990
        %2006 = vmatpush.bf16.msra.mxu0 %v1989
        %2007 = vmatpush.bf16.msra.mxu0 %v1988
        %2008 = vmatpush.bf16.msra.mxu0 %v1987
        %2009 = vmatpush.bf16.msra.mxu0 %v1986
        %2010 = vmatmul.bf16.gmra.mxu0 %v1952
        %v2011 = vpop.f32.mrf.mxu0
        %v2012 = vadd.f32 %v1947, %v2011
        %v2013 = vpop.f32.mrf.mxu0
        %v2014 = vadd.f32 %v1947, %v2013
        %2015 = vdwg.mxu0
        %v2016 = vadd.f32 %v1776, %v2012
        %v2017 = vadd.f32 %v1777, %v2014
        %2018 = vst.msk [vmem:[#allocation2] sm:$0xff] %vm612, %v2016
        %2019 = vst.msk [vmem:[#allocation2 + $0x8] sm:$0xff] %vm612, %v2017
        %p2020 = scmp.eq.s32.totalorder %s34, 1
        // Predicated region
        $region77: #{tpu_custom_call.1} parent=63 // pred_check
          %p2021 = pneg %p2020
        $region78: #{tpu_custom_call.1} parent=63 // pred_check_branch
          %2023 = sbr.rel (%p2021) target = $region80
        $region79: #{tpu_custom_call.1} parent=63 // pred_region
          %v2024 = vld [vmem:[%s9] sm:$0x1]
          %v2025 = vld [vmem:[%s10] sm:$0x1]
          %v2026 = vsel %vm612, %v2016, 0.0
          %2027 = vadd.xlane.f32.xlu0 %v2026
          %v2028 = vpop.xlane.xlu0 %2027
          %v2029 = vsel %vm612, %v2017, 0.0
          %2030 = vadd.xlane.f32.xlu0 %v2029
          %v2031 = vpop.xlane.xlu0 %2030
          %v2032 = vmul.f32 %v2028, %v625
          %v2033 = vmul.f32 %v2031, %v625
          %v2034 = vsub.f32 %v2016, %v2032
          %v2035 = vsub.f32 %v2017, %v2033
          %v2036 = vmul.f32 %v2034, %v2034
          %v2037 = vmul.f32 %v2035, %v2035
          %v2038 = vsel %vm612, %v2036, 0.0
          %2039 = vadd.xlane.f32.xlu0 %v2038
          %v2040 = vpop.xlane.xlu0 %2039
          %v2041 = vsel %vm612, %v2037, 0.0
          %2042 = vadd.xlane.f32.xlu0 %v2041
          %v2043 = vpop.xlane.xlu0 %2042
          %v2044 = vmul.f32 %v2040, %v625
          %v2045 = vmul.f32 %v2043, %v625
          %v2046 = vadd.f32 %v2044, 1e-05
          %v2047 = vadd.f32 %v2045, 1e-05
          %v2048 = vrsqrt.pop %v2046
          %v2049 = vmul.f32 %v2048, %v2046
          %v2050 = vmul.f32 %v2049, %v2048
          %v2051 = vmul.f32 0.5, %v2050
          %v2052 = vsub.f32 1.5, %v2051
          %v2053 = vmul.f32 %v2048, %v2052
          %vm2054 = vweird.f32 %v2046
          %vm2055 = vweird.f32 %v2048
          %vm2056 = vmor %vm2054, %vm2055
          %v2057 = vsel %vm2056, %v2048, %v2053
          %v2058 = vrsqrt.pop %v2047
          %v2059 = vmul.f32 %v2058, %v2047
          %v2060 = vmul.f32 %v2059, %v2058
          %v2061 = vmul.f32 0.5, %v2060
          %v2062 = vsub.f32 1.5, %v2061
          %v2063 = vmul.f32 %v2058, %v2062
          %vm2064 = vweird.f32 %v2047
          %vm2065 = vweird.f32 %v2058
          %vm2066 = vmor %vm2064, %vm2065
          %v2067 = vsel %vm2066, %v2058, %v2063
          %v2068 = vmul.f32 %v2034, %v2057
          %v2069 = vmul.f32 %v2035, %v2067
          %v2071 = vperm.slane %v2024, 0
          %v2073 = vmul.f32 %v2068, %v2071
          %v2074 = vmul.f32 %v2069, %v2071
          %v2076 = vperm.slane %v2025, 0
          %v2078 = vadd.f32 %v2073, %v2076
          %v2079 = vadd.f32 %v2074, %v2076
          %2080 = vst.msk [vmem:[#allocation8] sm:$0xff] %vm612, %v2078
          %2081 = vst.msk [vmem:[#allocation8 + $0x8] sm:$0xff] %vm612, %v2079
        $region80: #{tpu_custom_call.1} parent=63 // pred_fallthru
          _
        // Predicated region
        $region81: #{tpu_custom_call.1} parent=63 // pred_check
          %p2082 = pneg %p335
        $region82: #{tpu_custom_call.1} parent=63 // pred_check_branch
          %2084 = sbr.rel (%p2082) target = $region84
        $region83: #{tpu_custom_call.1} parent=63 // pred_region
          %s2085 = smul.u32 2, %s33
          %2087 = vsyncadd [#allocation5], 0
          %s2088 = smul.addr %s2085, 8
          %s2089 = scalar_lea.hbm %s11, %s2088
          %s2090 = sshll.u32 [#allocation8], 4
          %s2091 = int_to_ptr.vmem [resolvable:$true] %s2090
          %s2092 = sshll.u32 %s2089, 4
          %s2093 = int_to_ptr.hbm [resolvable:$true] %s2092
          %2098 = dma.vmem_to_hbm [thread:$0]  %s2091, 256, %s2093, [#allocation5], 128, 128, 8
        $region84: #{tpu_custom_call.1} parent=63 // pred_fallthru
          _
        // Predicated region
        $region85: #{tpu_custom_call.1} parent=63 // pred_check
          %p2099 = pneg %p335
        $region86: #{tpu_custom_call.1} parent=63 // pred_check_branch
          %2101 = sbr.rel (%p2099) target = $region88
        $region87: #{tpu_custom_call.1} parent=63 // pred_region
          %2103 = dma.done [#allocation5], 256
        $region88: #{tpu_custom_call.1} parent=63 // pred_fallthru
          _
      $region64: #{tpu_custom_call.1} parent=5 // pred_fallthru
        _
      %p2104 = scmp.le.s32.totalorder 2, %s24
      // Predicated region
      $region89: #{tpu_custom_call.1} parent=5 // pred_check
        %p2105 = pneg %p2104
      $region90: #{tpu_custom_call.1} parent=5 // pred_check_branch
        %2107 = sbr.rel (%p2105) target = $region92
      $region91: #{tpu_custom_call.1} parent=5 // pred_region
        %s2108 = ssub.s32 %s24, 2
      $region92: #{tpu_custom_call.1} parent=5 // pred_fallthru
        _
    $region6: #{tpu_custom_call.1} parent=1 // loop_footer
      %s28 = sadd.s32 1, %s24
    $region7: #{tpu_custom_call.1} parent=1 // loop_footer_branch
      %23 = sbr.rel target = $region3
    $region8: #{tpu_custom_call.1} parent=1 // loop_exit
      _
    %2109 = vsyncpa [#allocation4], 1
    %s2110 = scalar_lea.sflag [#allocation4], 1
    %2111 = vsyncpa %s2110, 1
    %2112 = vsyncpa [#allocation7], 1
    %s2113 = scalar_lea.sflag [#allocation7], 1
    %2114 = vsyncpa %s2113, 1
    %2115 = vsyncpa [#allocation5], 1
    %s2116 = scalar_lea.sflag [#allocation5], 1
    %2117 = vsyncpa %s2116, 1

</llo_original>
